<compile_context>
chip_gen: v7x
topology: tpu7x:2x2x1
jax: 0.10.0
libtpu: 0.0.40
codegen_flags: <defaults>
</compile_context>

<pallas_src>
import jax
import jax.numpy as jnp
from jax.experimental import pallas as pl
from jax.experimental.pallas import tpu as pltpu


def gclayer_kernel(states_ref, fwA_ref, bwA_ref, w_in_ref, w_up_ref, sh_ref,
                   out_ref):
    Sp = w_in_ref.shape[0] // 3
    act_dtype = w_in_ref.dtype                                 # compute dtype

    s = states_ref[...]                                        # (C, L)

    # One fused projection: rows [0:Sp]=condense, [Sp:2Sp]=fw, [2Sp:3Sp]=bw.
    # BN scales are already folded into w_in; only shifts are applied here.
    proj = jnp.dot(w_in_ref[...], s, preferred_element_type=jnp.float32)
    sh = sh_ref[...]                                           # (3Sp + C, 1)
    c_sh, f_sh = sh[:Sp], sh[Sp:2 * Sp]
    b_sh, u_sh = sh[2 * Sp:3 * Sp], sh[3 * Sp:]

    # condensed = relu(BN(condense(states)))
    cond = jnp.maximum(proj[0:Sp] + c_sh, 0.0)

    # message passing: single (Sp, L) @ (L, L) block-diagonal matmul per
    # direction -- full 128-aligned MXU N dimension, no per-batch slices.
    fwm = jnp.dot(proj[Sp:2 * Sp].astype(act_dtype), fwA_ref[...],
                  preferred_element_type=jnp.float32)
    bwm = jnp.dot(proj[2 * Sp:3 * Sp].astype(act_dtype), bwA_ref[...],
                  preferred_element_type=jnp.float32)
    fw_msg = jnp.maximum(fwm + f_sh, 0.0)
    bw_msg = jnp.maximum(bwm + b_sh, 0.0)

    # update on concat([condensed, fw_msg, bw_msg]) -- kept in vregs, no VMEM
    # scratch round trip.
    cat = jnp.concatenate([cond, fw_msg, bw_msg], axis=0).astype(act_dtype)
    upd = jnp.dot(w_up_ref[...], cat, preferred_element_type=jnp.float32)

    # residual add + relu, lane-dense full-width store
    out_ref[...] = jnp.maximum(upd + u_sh + s.astype(jnp.float32),
                               0.0).astype(out_ref.dtype)


def _bn_fold(gamma, beta, mean, var, eps=1e-5):
    scale = (gamma / jnp.sqrt(var + eps)).astype(jnp.float32)
    shift = (beta - mean * scale).astype(jnp.float32)
    return scale, shift


def _choose_grouping(B, N, target_lanes=512, min_lanes=256):
    """Batches packed into the lane dim per grid step.  Lane density wins over
    grid count: one fat step unless each split step still has >= min_lanes."""
    B = max(B, 1)
    if B * N <= target_lanes:
        return 1, B                                   # one fat step
    bb = min(B, max(1, target_lanes // max(N, 1)))
    while bb > 1 and B % bb != 0:                     # largest divisor of B
        bb -= 1
    if bb * N < min_lanes:                            # don't split below the
        return 1, B                                   # lane-density floor
    return B // bb, bb


def _block_diag(A, G, BB, N, Lp, dtype):
    """(B, N, N) -> (G, Lp, Lp) block-diagonal adjacency per batch group,
    zero-padded to the 128-aligned lane width Lp."""
    Ag = A.reshape(G, BB, N, N)
    eye = jnp.eye(BB, dtype=A.dtype)
    bd = jnp.einsum("gbnm,bc->gbncm", Ag, eye).reshape(G, BB * N, BB * N)
    pad = Lp - BB * N
    return jnp.pad(bd, ((0, 0), (0, pad), (0, pad))).astype(dtype)


def gclayer_forward(states, fw_A, bw_A, params, *,
                    compute_dtype=jnp.float32, out_dtype=jnp.float32):
    B, C, N = states.shape
    S = params["wc"].shape[0]

    G, BB = _choose_grouping(B, N)
    lanes = BB * N
    Lp = ((lanes + 127) // 128) * 128                 # 128-aligned lane width
    sub = 8 if jnp.dtype(compute_dtype).itemsize == 4 else 16
    Sp = ((S + sub - 1) // sub) * sub                 # sublane-aligned S block

    # ---- constant folding (in f32, before any low-precision cast) ----
    c_sc, c_sh = _bn_fold(*params["bn_c"])
    f_sc, f_sh = _bn_fold(*params["bn_f"])
    b_sc, b_sh = _bn_fold(*params["bn_b"])
    u_sc, u_sh = _bn_fold(*params["bn_u"])

    pad_r = lambda w: jnp.pad(w, ((0, Sp - S), (0, 0)))         # pad rows S->Sp
    pad_c = lambda w: jnp.pad(w, ((0, 0), (0, Sp - S)))         # pad cols S->Sp
    pad_v = lambda v: jnp.pad(v, (0, Sp - S))

    w_in = jnp.concatenate([pad_r(params["wc"] * c_sc[:, None]),
                            pad_r(params["wf"] * f_sc[:, None]),
                            pad_r(params["wb"] * b_sc[:, None])],
                           axis=0).astype(compute_dtype)        # (3Sp, C)
    wu_s = params["wu"] * u_sc[:, None]                         # (C, 3S)
    w_up = jnp.concatenate([pad_c(wu_s[:, i * S:(i + 1) * S]) for i in range(3)],
                           axis=1).astype(compute_dtype)        # (C, 3Sp)
    shifts = jnp.concatenate([pad_v(c_sh), pad_v(f_sh), pad_v(b_sh),
                              u_sh])[:, None].astype(jnp.float32)  # (3Sp+C, 1)

    # ---- layout plumbing: pack batch into the lane dim, pad to 128 ----
    s_packed = (states.reshape(G, BB, C, N).transpose(0, 2, 1, 3)
                .reshape(G, C, lanes))
    s_packed = jnp.pad(s_packed, ((0, 0), (0, 0), (0, Lp - lanes))
                       ).astype(compute_dtype)                  # (G, C, Lp)
    fwA_bd = _block_diag(fw_A, G, BB, N, Lp, compute_dtype)     # (G, Lp, Lp)
    bwA_bd = _block_diag(bw_A, G, BB, N, Lp, compute_dtype)

    # ---- explicit VMEM budget (v7x: 64 MiB physical, 32 MiB default) ----
    itc = jnp.dtype(compute_dtype).itemsize
    ito = jnp.dtype(out_dtype).itemsize
    per_step = C * Lp * itc + 2 * Lp * Lp * itc + C * Lp * ito
    weights_b = 2 * (3 * Sp * C) * itc + (3 * Sp + C) * 4
    footprint = 2 * (per_step + weights_b)            # double-buffered
    vmem_limit = int(min(max(2 * footprint, 32 << 20), 64 << 20))

    full = lambda shp: pl.BlockSpec(shp, lambda g: (0,) * len(shp))
    sq = pl.Squeezed()

    out_packed = pl.pallas_call(
        gclayer_kernel,
        out_shape=jax.ShapeDtypeStruct((G, C, Lp), out_dtype),
        grid_spec=pltpu.PrefetchScalarGridSpec(
            num_scalar_prefetch=0,
            grid=(G,),
            in_specs=[
                pl.BlockSpec((sq, C, Lp), lambda g: (g, 0, 0)),    # states slab
                pl.BlockSpec((sq, Lp, Lp), lambda g: (g, 0, 0)),   # fw_A (blkdiag)
                pl.BlockSpec((sq, Lp, Lp), lambda g: (g, 0, 0)),   # bw_A (blkdiag)
                full((3 * Sp, C)),                                 # fused proj W
                full((C, 3 * Sp)),                                 # update W
                full((3 * Sp + C, 1)),                             # packed shifts
            ],
            out_specs=pl.BlockSpec((sq, C, Lp), lambda g: (g, 0, 0)),
        ),
        compiler_params=pltpu.CompilerParams(
            dimension_semantics=("parallel",),
            vmem_limit_bytes=vmem_limit),
    )(s_packed, fwA_bd, bwA_bd, w_in, w_up, shifts)

    out = out_packed[:, :, :lanes].reshape(G, C, BB, N).transpose(0, 2, 1, 3)
    return out.reshape(B, C, N).astype(jnp.float32)


def gclayer_reference(states, fw_A, bw_A, params):
    """Pure-JAX reference (eval-mode BatchNorm), unfolded."""
    def bn(x, p):
        gamma, beta, mean, var = p
        sc = gamma / jnp.sqrt(var + 1e-5)
        sh = beta - mean * sc
        return x * sc[None, :, None] + sh[None, :, None]

    relu = lambda x: jnp.maximum(x, 0.0)
    cond = relu(bn(jnp.einsum("oi,bin->bon", params["wc"], states), params["bn_c"]))
    fw = jnp.einsum("oi,bin->bon", params["wf"], states)
    fw = relu(bn(jnp.einsum("bsn,bnm->bsm", fw, fw_A), params["bn_f"]))
    bw = jnp.einsum("oi,bin->bon", params["wb"], states)
    bw = relu(bn(jnp.einsum("bsn,bnm->bsm", bw, bw_A), params["bn_b"]))
    cat = jnp.concatenate([cond, fw, bw], axis=1)
    upd = bn(jnp.einsum("oc,bcn->bon", params["wu"], cat), params["bn_u"])
    return relu(upd + states)


if __name__ == "__main__":
    # Same matmul precision on both the Pallas and the XLA reference path.
    jax.config.update("jax_default_matmul_precision", "highest")

    B, in_size, state_size, N = 2, 32, 16, 8   # batch, in chans, state chans, nodes

    key = jax.random.PRNGKey(0)
    ks = jax.random.split(key, 16)

    states = jax.random.normal(ks[0], (B, in_size, N), dtype=jnp.float32)
    fw_A = jax.random.uniform(ks[1], (B, N, N), dtype=jnp.float32)
    bw_A = jax.random.uniform(ks[2], (B, N, N), dtype=jnp.float32)

    # Conv1d(kernel=1, bias=False) weights, squeezed to (out, in).
    def conv_w(k, out_c, in_c):
        return (jax.random.normal(k, (out_c, in_c), dtype=jnp.float32)
                * (1.0 / jnp.sqrt(in_c)))

    # Non-trivial eval-mode BN params so the scale/shift folding is exercised.
    def bn_rand(k, c):
        k1, k2, k3, k4 = jax.random.split(k, 4)
        gamma = jax.random.uniform(k1, (c,), jnp.float32, 0.5, 1.5)
        beta = 0.1 * jax.random.normal(k2, (c,), jnp.float32)
        mean = 0.1 * jax.random.normal(k3, (c,), jnp.float32)
        var = jax.random.uniform(k4, (c,), jnp.float32, 0.5, 1.5)
        return (gamma, beta, mean, var)

    params = {
        "wc": conv_w(ks[3], state_size, in_size),
        "wf": conv_w(ks[4], state_size, in_size),
        "wb": conv_w(ks[5], state_size, in_size),
        "wu": conv_w(ks[6], in_size, 3 * state_size),
        "bn_c": bn_rand(ks[7], state_size),
        "bn_f": bn_rand(ks[8], state_size),
        "bn_b": bn_rand(ks[9], state_size),
        "bn_u": bn_rand(ks[10], in_size),
    }

    # f32 for the bit-faithful check; pass compute_dtype=jnp.bfloat16 on
    # v6e/v7x (and for MXU operands on v5e) in production.
    out = gclayer_forward(states, fw_A, bw_A, params)
    out = jax.block_until_ready(out)

    ref = gclayer_reference(states, fw_A, bw_A, params)
    assert out.shape == (B, in_size, N)
    assert jnp.allclose(out, ref, atol=1e-4, rtol=1e-4), "mismatch vs reference"

    print("KERNEL_OK")
</pallas_src>

<mosaic_0001>
module attributes {stable_mosaic.version = 11 : i64} {
  func.func @gclayer_kernel(%arg0: i32, %arg1: memref<1x32x128xf32, #tpu.memory_space<vmem>>, %arg2: memref<1x128x128xf32, #tpu.memory_space<vmem>>, %arg3: memref<1x128x128xf32, #tpu.memory_space<vmem>>, %arg4: memref<48x32xf32, #tpu.memory_space<vmem>>, %arg5: memref<32x48xf32, #tpu.memory_space<vmem>>, %arg6: memref<80x1xf32, #tpu.memory_space<vmem>>, %arg7: memref<1x32x128xf32, #tpu.memory_space<vmem>>) attributes {dimension_semantics = [#tpu.dimension_semantics<parallel>], iteration_bounds = array<i64: 1>, scalar_prefetch = 0 : i64, scratch_operands = 0 : i64, tpu.core_type = #tpu.core_type<tc>, window_params = [{transform_indices = @transform_0, window_bounds = array<i64: 1, 32, 128>}, {transform_indices = @transform_1, window_bounds = array<i64: 1, 128, 128>}, {transform_indices = @transform_2, window_bounds = array<i64: 1, 128, 128>}, {pipeline_mode = #tpu.pipeline_mode<synchronous>, transform_indices = @transform_3, window_bounds = array<i64: 48, 32>}, {pipeline_mode = #tpu.pipeline_mode<synchronous>, transform_indices = @transform_4, window_bounds = array<i64: 32, 48>}, {pipeline_mode = #tpu.pipeline_mode<synchronous>, transform_indices = @transform_5, window_bounds = array<i64: 80, 1>}, {transform_indices = @transform_6, window_bounds = array<i64: 1, 32, 128>}]} {
    %c0 = arith.constant 0 : index
    %c0_0 = arith.constant 0 : index
    %c0_1 = arith.constant 0 : index
    %0 = vector.load %arg1[%c0, %c0_0, %c0_1] : memref<1x32x128xf32, #tpu.memory_space<vmem>>, vector<1x32x128xf32>
    %1 = vector.shape_cast %0 : vector<1x32x128xf32> to vector<32x128xf32>
    %c0_2 = arith.constant 0 : index
    %c0_3 = arith.constant 0 : index
    %2 = vector.load %arg4[%c0_2, %c0_3] : memref<48x32xf32, #tpu.memory_space<vmem>>, vector<48x32xf32>
    %cst = arith.constant dense<0.000000e+00> : vector<48x128xf32>
    %3 = tpu.matmul %2, %1, %cst {dimension_numbers = #tpu.dot_dimension_numbers<[1], [0], [0], [1], [0, 0, 1, 1], [], []>, precision = #tpu.contract_precision<fp32>} : vector<48x32xf32>, vector<32x128xf32>, vector<48x128xf32> -> vector<48x128xf32>
    %c0_4 = arith.constant 0 : index
    %c0_5 = arith.constant 0 : index
    %4 = vector.load %arg6[%c0_4, %c0_5] : memref<80x1xf32, #tpu.memory_space<vmem>>, vector<80x1xf32>
    %5 = vector.extract_strided_slice %4 {offsets = [0, 0], sizes = [16, 1], strides = [1, 1]} : vector<80x1xf32> to vector<16x1xf32>
    %6 = vector.extract_strided_slice %4 {offsets = [16, 0], sizes = [16, 1], strides = [1, 1]} : vector<80x1xf32> to vector<16x1xf32>
    %7 = vector.extract_strided_slice %4 {offsets = [32, 0], sizes = [16, 1], strides = [1, 1]} : vector<80x1xf32> to vector<16x1xf32>
    %8 = vector.extract_strided_slice %4 {offsets = [48, 0], sizes = [32, 1], strides = [1, 1]} : vector<80x1xf32> to vector<32x1xf32>
    %9 = vector.extract_strided_slice %3 {offsets = [0, 0], sizes = [16, 128], strides = [1, 1]} : vector<48x128xf32> to vector<16x128xf32>
    %10 = vector.broadcast %5 : vector<16x1xf32> to vector<16x128xf32>
    %11 = arith.addf %9, %10 : vector<16x128xf32>
    %cst_6 = arith.constant 0.000000e+00 : f32
    %12 = vector.broadcast %cst_6 : f32 to vector<16x128xf32>
    %13 = arith.maximumf %11, %12 : vector<16x128xf32>
    %14 = vector.extract_strided_slice %3 {offsets = [16, 0], sizes = [16, 128], strides = [1, 1]} : vector<48x128xf32> to vector<16x128xf32>
    %c0_7 = arith.constant 0 : index
    %c0_8 = arith.constant 0 : index
    %c0_9 = arith.constant 0 : index
    %15 = vector.load %arg2[%c0_7, %c0_8, %c0_9] : memref<1x128x128xf32, #tpu.memory_space<vmem>>, vector<1x128x128xf32>
    %16 = vector.shape_cast %15 : vector<1x128x128xf32> to vector<128x128xf32>
    %cst_10 = arith.constant dense<0.000000e+00> : vector<16x128xf32>
    %17 = tpu.matmul %14, %16, %cst_10 {dimension_numbers = #tpu.dot_dimension_numbers<[1], [0], [0], [1], [0, 0, 1, 1], [], []>, precision = #tpu.contract_precision<fp32>} : vector<16x128xf32>, vector<128x128xf32>, vector<16x128xf32> -> vector<16x128xf32>
    %18 = vector.extract_strided_slice %3 {offsets = [32, 0], sizes = [16, 128], strides = [1, 1]} : vector<48x128xf32> to vector<16x128xf32>
    %c0_11 = arith.constant 0 : index
    %c0_12 = arith.constant 0 : index
    %c0_13 = arith.constant 0 : index
    %19 = vector.load %arg3[%c0_11, %c0_12, %c0_13] : memref<1x128x128xf32, #tpu.memory_space<vmem>>, vector<1x128x128xf32>
    %20 = vector.shape_cast %19 : vector<1x128x128xf32> to vector<128x128xf32>
    %cst_14 = arith.constant dense<0.000000e+00> : vector<16x128xf32>
    %21 = tpu.matmul %18, %20, %cst_14 {dimension_numbers = #tpu.dot_dimension_numbers<[1], [0], [0], [1], [0, 0, 1, 1], [], []>, precision = #tpu.contract_precision<fp32>} : vector<16x128xf32>, vector<128x128xf32>, vector<16x128xf32> -> vector<16x128xf32>
    %22 = vector.broadcast %6 : vector<16x1xf32> to vector<16x128xf32>
    %23 = arith.addf %17, %22 : vector<16x128xf32>
    %cst_15 = arith.constant 0.000000e+00 : f32
    %24 = vector.broadcast %cst_15 : f32 to vector<16x128xf32>
    %25 = arith.maximumf %23, %24 : vector<16x128xf32>
    %26 = vector.broadcast %7 : vector<16x1xf32> to vector<16x128xf32>
    %27 = arith.addf %21, %26 : vector<16x128xf32>
    %cst_16 = arith.constant 0.000000e+00 : f32
    %28 = vector.broadcast %cst_16 : f32 to vector<16x128xf32>
    %29 = arith.maximumf %27, %28 : vector<16x128xf32>
    %30 = tpu.concatenate %13, %25, %29 in 0 : vector<16x128xf32>, vector<16x128xf32>, vector<16x128xf32> -> vector<48x128xf32>
    %c0_17 = arith.constant 0 : index
    %c0_18 = arith.constant 0 : index
    %31 = vector.load %arg5[%c0_17, %c0_18] : memref<32x48xf32, #tpu.memory_space<vmem>>, vector<32x48xf32>
    %cst_19 = arith.constant dense<0.000000e+00> : vector<32x128xf32>
    %32 = tpu.matmul %31, %30, %cst_19 {dimension_numbers = #tpu.dot_dimension_numbers<[1], [0], [0], [1], [0, 0, 1, 1], [], []>, precision = #tpu.contract_precision<fp32>} : vector<32x48xf32>, vector<48x128xf32>, vector<32x128xf32> -> vector<32x128xf32>
    %33 = vector.broadcast %8 : vector<32x1xf32> to vector<32x128xf32>
    %34 = arith.addf %32, %33 : vector<32x128xf32>
    %35 = arith.addf %34, %1 : vector<32x128xf32>
    %cst_20 = arith.constant 0.000000e+00 : f32
    %36 = vector.broadcast %cst_20 : f32 to vector<32x128xf32>
    %37 = arith.maximumf %35, %36 : vector<32x128xf32>
    %c0_21 = arith.constant 0 : index
    %c0_22 = arith.constant 0 : index
    %c0_23 = arith.constant 0 : index
    %38 = vector.load %arg7[%c0_21, %c0_22, %c0_23] : memref<1x32x128xf32, #tpu.memory_space<vmem>>, vector<1x32x128xf32>
    %39 = vector.shape_cast %38 : vector<1x32x128xf32> to vector<32x128xf32>
    %40 = vector.shape_cast %37 : vector<32x128xf32> to vector<1x32x128xf32>
    tpu.vector_store %arg7[%c0_21, %c0_22, %c0_23], %40 {strides = array<i32>} : memref<1x32x128xf32, #tpu.memory_space<vmem>>, vector<1x32x128xf32>,
    return
  }
  func.func @transform_0(%arg0: i32) -> (i32, i32, i32) {
    %c0_i32 = arith.constant 0 : i32
    %c0_i32_0 = arith.constant 0 : i32
    %c0_i32_1 = arith.constant 0 : i32
    return %arg0, %c0_i32, %c0_i32_0 : i32, i32, i32
  }
  func.func @transform_1(%arg0: i32) -> (i32, i32, i32) {
    %c0_i32 = arith.constant 0 : i32
    %c0_i32_0 = arith.constant 0 : i32
    %c0_i32_1 = arith.constant 0 : i32
    return %arg0, %c0_i32, %c0_i32_0 : i32, i32, i32
  }
  func.func @transform_2(%arg0: i32) -> (i32, i32, i32) {
    %c0_i32 = arith.constant 0 : i32
    %c0_i32_0 = arith.constant 0 : i32
    %c0_i32_1 = arith.constant 0 : i32
    return %arg0, %c0_i32, %c0_i32_0 : i32, i32, i32
  }
  func.func @transform_3(%arg0: i32) -> (i32, i32) {
    %c0_i32 = arith.constant 0 : i32
    %c0_i32_0 = arith.constant 0 : i32
    %c0_i32_1 = arith.constant 0 : i32
    return %c0_i32, %c0_i32_0 : i32, i32
  }
  func.func @transform_4(%arg0: i32) -> (i32, i32) {
    %c0_i32 = arith.constant 0 : i32
    %c0_i32_0 = arith.constant 0 : i32
    %c0_i32_1 = arith.constant 0 : i32
    return %c0_i32, %c0_i32_0 : i32, i32
  }
  func.func @transform_5(%arg0: i32) -> (i32, i32) {
    %c0_i32 = arith.constant 0 : i32
    %c0_i32_0 = arith.constant 0 : i32
    %c0_i32_1 = arith.constant 0 : i32
    return %c0_i32, %c0_i32_0 : i32, i32
  }
  func.func @transform_6(%arg0: i32) -> (i32, i32, i32) {
    %c0_i32 = arith.constant 0 : i32
    %c0_i32_0 = arith.constant 0 : i32
    %c0_i32_1 = arith.constant 0 : i32
    return %arg0, %c0_i32, %c0_i32_0 : i32, i32, i32
  }
}

</mosaic_0001>

<llo_original>
// kernel: tpu_custom_call.1
$region0: #{tpu_custom_call.1}
  #allocation0 [shape = 'u32[]', space=smem, size = 0x4, offset = 0x4, fixed_abs, tag = 'smem constant byte address 0x4 - core index']
  #allocation1 [shape = 'u32[144,128]{1,0:T(1,128)}', space=vmem, size = 0x12000, scoped, tag = 'internal scratch']
  %s0 = inlined_call_operand.vmem [shape: f32[1,32,128], index: 0, kind: input, shape index: {}]
  %s1 = inlined_call_operand.vmem [shape: f32[1,128,128], index: 1, kind: input, shape index: {}]
  %s2 = inlined_call_operand.hbm [shape: f32[1,128,128], index: 2, kind: input, shape index: {}]
  %s3 = inlined_call_operand.vmem [shape: f32[48,32], index: 3, kind: input, shape index: {}]
  %s4 = inlined_call_operand.hbm [shape: f32[32,48], index: 4, kind: input, shape index: {}]
  %s5 = inlined_call_operand.vmem [shape: f32[80,1], index: 5, kind: input, shape index: {}]
  %s6 = inlined_call_operand.hbm [shape: f32[1,32,128], index: 6, kind: output, shape index: {}]
  %s7 = sld [smem:[#allocation0]]
  $region42: #{tpu_custom_call.1} parent=0
    _
  %s9 = ssub.s32 1, %s7
  %s10 = scalar_select 0, %s9, %s7
  $region1: #{tpu_custom_call.1} parent=0
    #allocation2 [shape = 'u8[65536]{0}', space=vmem, size = 0x10000, scoped, tag = 'input window, operand 2, single buffered']
    #allocation3 [shape = 's32[1]{0}', space=sflag, size = 0x4, scoped, tag = 'scoped memory for tpu_custom_call.1']
    #allocation4 [shape = 's32[1]{0}', space=sflag, size = 0x4, scoped, tag = 'scoped memory for tpu_custom_call.1']
    #allocation5 [shape = 'u8[16384]{0}', space=vmem, size = 0x4000, scoped, tag = 'input window, operand 4, single buffered']
    #allocation6 [shape = 's32[1]{0}', space=sflag, size = 0x4, scoped, tag = 'scoped memory for tpu_custom_call.1']
    #allocation7 [shape = 'u8[16384]{0}', space=vmem, size = 0x4000, scoped, tag = 'output window, operand 0, single buffered']
    %11 = vsyncpa [#allocation3], 0
    %12 = vsyncpa [#allocation6], 0
    %13 = vsyncpa [#allocation4], 0
    // Predicated region
    $region2: #{tpu_custom_call.1} parent=1 // pred_check
      _
    $region3: #{tpu_custom_call.1} parent=1 // pred_check_branch
      %15 = sbr.rel (0) target = $region5
    $region4: #{tpu_custom_call.1} parent=1 // pred_region
      _
    $region5: #{tpu_custom_call.1} parent=1 // pred_fallthru
      _
    // Predicated region
    $region6: #{tpu_custom_call.1} parent=1 // pred_check
      _
    $region7: #{tpu_custom_call.1} parent=1 // pred_check_branch
      %17 = sbr.rel (0) target = $region9
    $region8: #{tpu_custom_call.1} parent=1 // pred_region
      _
    $region9: #{tpu_custom_call.1} parent=1 // pred_fallthru
      _
    // Predicated region
    $region10: #{tpu_custom_call.1} parent=1 // pred_check
      _
    $region11: #{tpu_custom_call.1} parent=1 // pred_check_branch
      %19 = sbr.rel (0) target = $region13
    $region12: #{tpu_custom_call.1} parent=1 // pred_region
      %s21 = ssub.s32 2048, 2048
      %22 = vsyncadd [#allocation3], %s21
      %s23 = sshll.u32 [#allocation2], 4
      %s24 = int_to_ptr.vmem [resolvable:$true] %s23
      %29 = dma.hbm_to_vmem [thread:$0]  %s2, 2048, %s24, [#allocation3], 128, 128, 8
    $region13: #{tpu_custom_call.1} parent=1 // pred_fallthru
      _
    // Predicated region
    $region14: #{tpu_custom_call.1} parent=1 // pred_check
      _
    $region15: #{tpu_custom_call.1} parent=1 // pred_check_branch
      %31 = sbr.rel (0) target = $region17
    $region16: #{tpu_custom_call.1} parent=1 // pred_region
      _
    $region17: #{tpu_custom_call.1} parent=1 // pred_fallthru
      _
    // Predicated region
    $region18: #{tpu_custom_call.1} parent=1 // pred_check
      _
    $region19: #{tpu_custom_call.1} parent=1 // pred_check_branch
      %33 = sbr.rel (0) target = $region21
    $region20: #{tpu_custom_call.1} parent=1 // pred_region
      %s35 = ssub.s32 512, 512
      %36 = vsyncadd [#allocation6], %s35
      %s37 = sshll.u32 [#allocation5], 4
      %s38 = int_to_ptr.vmem [resolvable:$true] %s37
      %43 = dma.hbm_to_vmem [thread:$0]  %s4, 512, %s38, [#allocation6], 128, 128, 8
    $region21: #{tpu_custom_call.1} parent=1 // pred_fallthru
      _
    // Predicated region
    $region22: #{tpu_custom_call.1} parent=1 // pred_check
      _
    $region23: #{tpu_custom_call.1} parent=1 // pred_check_branch
      %45 = sbr.rel (0) target = $region25
    $region24: #{tpu_custom_call.1} parent=1 // pred_region
      _
    $region25: #{tpu_custom_call.1} parent=1 // pred_fallthru
      _
    // Predicated region
    $region26: #{tpu_custom_call.1} parent=1 // pred_check
      _
    $region27: #{tpu_custom_call.1} parent=1 // pred_check_branch
      %47 = sbr.rel (0) target = $region29
    $region28: #{tpu_custom_call.1} parent=1 // pred_region
      %48 = dma.done [#allocation3], 2048
    $region29: #{tpu_custom_call.1} parent=1 // pred_fallthru
      _
    // Predicated region
    $region30: #{tpu_custom_call.1} parent=1 // pred_check
      _
    $region31: #{tpu_custom_call.1} parent=1 // pred_check_branch
      %50 = sbr.rel (0) target = $region33
    $region32: #{tpu_custom_call.1} parent=1 // pred_region
      %51 = dma.done [#allocation6], 512
    $region33: #{tpu_custom_call.1} parent=1 // pred_fallthru
      _
    %v52 = vld [vmem:[%s0] sm:$0xff]
    %v53 = vld [vmem:[%s0 + $0x8] sm:$0xff]
    %v54 = vld [vmem:[%s0 + $0x10] sm:$0xff]
    %v55 = vld [vmem:[%s0 + $0x18] sm:$0xff]
    %v56 = vld [vmem:[%s3] sm:$0xff]
    %v57 = vld [vmem:[%s3 + $0x8] sm:$0xff]
    %v58 = vld [vmem:[%s3 + $0x10] sm:$0xff]
    %v59 = vld [vmem:[%s3 + $0x18] sm:$0xff]
    %v60 = vld [vmem:[%s3 + $0x20] sm:$0xff]
    %v61 = vld [vmem:[%s3 + $0x28] sm:$0xff]
    %vm62 = vcmask 261120
    %v64 = vsel %vm62, %v56, 0
    %v67 = vsel %vm62, %v57, 0
    %v70 = vsel %vm62, %v58, 0
    %v73 = vsel %vm62, %v59, 0
    %v76 = vsel %vm62, %v60, 0
    %v79 = vsel %vm62, %v61, 0
    %81 = vmatprep.subr.mxu0 0.0
    %v82 = vand.u32 %v52, 4294901760
    %83 = vmatpush1.msra.mxu0 %v82
    %84 = vmatprep.subr.mxu0 0.0
    %v85 = vand.u32 %v53, 4294901760
    %86 = vmatpush1.msra.mxu0 %v85
    %87 = vmatprep.subr.mxu0 0.0
    %v88 = vand.u32 %v54, 4294901760
    %89 = vmatpush1.msra.mxu0 %v88
    %90 = vmatprep.subr.mxu0 0.0
    %v91 = vand.u32 %v55, 4294901760
    %92 = vmatpush1.msra.mxu0 %v91
    %93 = vmatprep.subr.mxu0 0.0
    %94 = vmatpush1.msra.mxu0 0.0
    %95 = vmatprep.subr.mxu0 0.0
    %96 = vmatpush1.msra.mxu0 0.0
    %97 = vmatprep.subr.mxu0 0.0
    %98 = vmatpush1.msra.mxu0 0.0
    %99 = vmatprep.subr.mxu0 0.0
    %100 = vmatpush1.msra.mxu0 0.0
    %101 = vmatprep.subr.mxu0 0.0
    %102 = vmatpush1.msra.mxu0 0.0
    %103 = vmatprep.subr.mxu0 0.0
    %104 = vmatpush1.msra.mxu0 0.0
    %105 = vmatprep.subr.mxu0 0.0
    %106 = vmatpush1.msra.mxu0 0.0
    %107 = vmatprep.subr.mxu0 0.0
    %108 = vmatpush1.msra.mxu0 0.0
    %109 = vmatprep.subr.mxu0 0.0
    %110 = vmatpush1.msra.mxu0 0.0
    %111 = vmatprep.subr.mxu0 0.0
    %112 = vmatpush1.msra.mxu0 0.0
    %113 = vmatprep.subr.mxu0 0.0
    %114 = vmatpush1.msra.mxu0 0.0
    %115 = vmatprep.subr.mxu0 0.0
    %116 = vmatpush1.msra.mxu0 0.0
    %117 = vmatprep.subr.mxu0 0.0
    %118 = vmatpush1.msra.mxu0 0.0
    %119 = vmatprep.subr.mxu0 0.0
    %120 = vmatpush1.msra.mxu0 0.0
    %121 = vmatprep.subr.mxu0 0.0
    %122 = vmatpush1.msra.mxu0 0.0
    %123 = vmatprep.subr.mxu0 0.0
    %124 = vmatpush1.msra.mxu0 0.0
    %125 = vmatprep.subr.mxu0 0.0
    %126 = vmatpush1.msra.mxu0 0.0
    %127 = vmatprep.subr.mxu0 0.0
    %128 = vmatpush1.msra.mxu0 0.0
    %129 = vmatprep.subr.mxu0 0.0
    %130 = vmatpush1.msra.mxu0 0.0
    %131 = vmatprep.subr.mxu0 0.0
    %132 = vmatpush1.msra.mxu0 0.0
    %133 = vmatprep.subr.mxu0 0.0
    %134 = vmatpush1.msra.mxu0 0.0
    %135 = vmatprep.subr.mxu0 0.0
    %136 = vmatpush1.msra.mxu0 0.0
    %137 = vmatprep.subr.mxu0 0.0
    %138 = vmatpush1.msra.mxu0 0.0
    %139 = vmatprep.subr.mxu0 0.0
    %140 = vmatpush1.msra.mxu0 0.0
    %141 = vmatprep.subr.mxu0 0.0
    %142 = vmatpush1.msra.mxu0 0.0
    %143 = vmatprep.subr.mxu0 0.0
    %144 = vmatpush1.msra.mxu0 0.0
    %145 = vmatprep.subr.mxu0 0.0
    %146 = vmatpush1.msra.mxu0 0.0
    %147 = vmatprep.subr.mxu0 0.0
    %148 = vmatpush1.msra.mxu0 0.0
    %149 = vmatprep.mubr.f32.mxu0 0.0
    %v150 = vand.u32 %v64, 4294901760
    %v151 = vsub.f32 %v64, %v150
    %v152 = vand.u32 %v151, 4294901760
    %v153 = vsub.f32 %v151, %v152
    %v154 = vand.u32 %v153, 4294901760
    %155 = vmatmul.mubr.f32.gmra.mrb[0].mxu0 %v154
    %v156 = vpop.f32.mrb[0].mxu0
    %v157 = vadd.f32 0.0, %v156
    %v158 = vpop.f32.mrb[0].mxu0
    %159 = vmatprep.mubr.f32.mxu0 0.0
    %v160 = vand.u32 %v67, 4294901760
    %v161 = vsub.f32 %v67, %v160
    %v162 = vand.u32 %v161, 4294901760
    %v163 = vsub.f32 %v161, %v162
    %v164 = vand.u32 %v163, 4294901760
    %165 = vmatmul.mubr.f32.gmra.mrb[0].mxu0 %v164
    %v166 = vpop.f32.mrb[0].mxu0
    %v167 = vadd.f32 0.0, %v166
    %v168 = vpop.f32.mrb[0].mxu0
    %169 = vmatprep.mubr.f32.mxu0 0.0
    %v170 = vand.u32 %v70, 4294901760
    %v171 = vsub.f32 %v70, %v170
    %v172 = vand.u32 %v171, 4294901760
    %v173 = vsub.f32 %v171, %v172
    %v174 = vand.u32 %v173, 4294901760
    %175 = vmatmul.mubr.f32.gmra.mrb[0].mxu0 %v174
    %v176 = vpop.f32.mrb[0].mxu0
    %v177 = vadd.f32 0.0, %v176
    %v178 = vpop.f32.mrb[0].mxu0
    %179 = vmatprep.mubr.f32.mxu0 0.0
    %v180 = vand.u32 %v73, 4294901760
    %v181 = vsub.f32 %v73, %v180
    %v182 = vand.u32 %v181, 4294901760
    %v183 = vsub.f32 %v181, %v182
    %v184 = vand.u32 %v183, 4294901760
    %185 = vmatmul.mubr.f32.gmra.mrb[0].mxu0 %v184
    %v186 = vpop.f32.mrb[0].mxu0
    %v187 = vadd.f32 0.0, %v186
    %v188 = vpop.f32.mrb[0].mxu0
    %189 = vmatprep.mubr.f32.mxu0 0.0
    %v190 = vand.u32 %v76, 4294901760
    %v191 = vsub.f32 %v76, %v190
    %v192 = vand.u32 %v191, 4294901760
    %v193 = vsub.f32 %v191, %v192
    %v194 = vand.u32 %v193, 4294901760
    %195 = vmatmul.mubr.f32.gmra.mrb[0].mxu0 %v194
    %v196 = vpop.f32.mrb[0].mxu0
    %v197 = vadd.f32 0.0, %v196
    %v198 = vpop.f32.mrb[0].mxu0
    %199 = vmatprep.mubr.f32.mxu0 0.0
    %v200 = vand.u32 %v79, 4294901760
    %v201 = vsub.f32 %v79, %v200
    %v202 = vand.u32 %v201, 4294901760
    %v203 = vsub.f32 %v201, %v202
    %v204 = vand.u32 %v203, 4294901760
    %205 = vmatmul.mubr.f32.gmra.mrb[0].mxu0 %v204
    %v206 = vpop.f32.mrb[0].mxu0
    %v207 = vadd.f32 0.0, %v206
    %v208 = vpop.f32.mrb[0].mxu0
    %209 = vdwg.mxu0
    %210 = vmatprep.subr.mxu0 0.0
    %v211 = vand.u32 %v52, 4294901760
    %v212 = vsub.f32 %v52, %v211
    %v213 = vand.u32 %v212, 4294901760
    %v214 = vsub.f32 %v212, %v213
    %v215 = vand.u32 %v214, 4294901760
    %216 = vmatpush1.msra.mxu0 %v215
    %217 = vmatprep.subr.mxu0 0.0
    %v218 = vand.u32 %v53, 4294901760
    %v219 = vsub.f32 %v53, %v218
    %v220 = vand.u32 %v219, 4294901760
    %v221 = vsub.f32 %v219, %v220
    %v222 = vand.u32 %v221, 4294901760
    %223 = vmatpush1.msra.mxu0 %v222
    %224 = vmatprep.subr.mxu0 0.0
    %v225 = vand.u32 %v54, 4294901760
    %v226 = vsub.f32 %v54, %v225
    %v227 = vand.u32 %v226, 4294901760
    %v228 = vsub.f32 %v226, %v227
    %v229 = vand.u32 %v228, 4294901760
    %230 = vmatpush1.msra.mxu0 %v229
    %231 = vmatprep.subr.mxu0 0.0
    %v232 = vand.u32 %v55, 4294901760
    %v233 = vsub.f32 %v55, %v232
    %v234 = vand.u32 %v233, 4294901760
    %v235 = vsub.f32 %v233, %v234
    %v236 = vand.u32 %v235, 4294901760
    %237 = vmatpush1.msra.mxu0 %v236
    %238 = vmatprep.subr.mxu0 0.0
    %239 = vmatpush1.msra.mxu0 0.0
    %240 = vmatprep.subr.mxu0 0.0
    %241 = vmatpush1.msra.mxu0 0.0
    %242 = vmatprep.subr.mxu0 0.0
    %243 = vmatpush1.msra.mxu0 0.0
    %244 = vmatprep.subr.mxu0 0.0
    %245 = vmatpush1.msra.mxu0 0.0
    %246 = vmatprep.subr.mxu0 0.0
    %247 = vmatpush1.msra.mxu0 0.0
    %248 = vmatprep.subr.mxu0 0.0
    %249 = vmatpush1.msra.mxu0 0.0
    %250 = vmatprep.subr.mxu0 0.0
    %251 = vmatpush1.msra.mxu0 0.0
    %252 = vmatprep.subr.mxu0 0.0
    %253 = vmatpush1.msra.mxu0 0.0
    %254 = vmatprep.subr.mxu0 0.0
    %255 = vmatpush1.msra.mxu0 0.0
    %256 = vmatprep.subr.mxu0 0.0
    %257 = vmatpush1.msra.mxu0 0.0
    %258 = vmatprep.subr.mxu0 0.0
    %259 = vmatpush1.msra.mxu0 0.0
    %260 = vmatprep.subr.mxu0 0.0
    %261 = vmatpush1.msra.mxu0 0.0
    %262 = vmatprep.subr.mxu0 0.0
    %263 = vmatpush1.msra.mxu0 0.0
    %264 = vmatprep.subr.mxu0 0.0
    %265 = vmatpush1.msra.mxu0 0.0
    %266 = vmatprep.subr.mxu0 0.0
    %267 = vmatpush1.msra.mxu0 0.0
    %268 = vmatprep.subr.mxu0 0.0
    %269 = vmatpush1.msra.mxu0 0.0
    %270 = vmatprep.subr.mxu0 0.0
    %271 = vmatpush1.msra.mxu0 0.0
    %272 = vmatprep.subr.mxu0 0.0
    %273 = vmatpush1.msra.mxu0 0.0
    %274 = vmatprep.subr.mxu0 0.0
    %275 = vmatpush1.msra.mxu0 0.0
    %276 = vmatprep.subr.mxu0 0.0
    %277 = vmatpush1.msra.mxu0 0.0
    %278 = vmatprep.subr.mxu0 0.0
    %279 = vmatpush1.msra.mxu0 0.0
    %280 = vmatprep.subr.mxu0 0.0
    %281 = vmatpush1.msra.mxu0 0.0
    %282 = vmatprep.subr.mxu0 0.0
    %283 = vmatpush1.msra.mxu0 0.0
    %284 = vmatprep.subr.mxu0 0.0
    %285 = vmatpush1.msra.mxu0 0.0
    %286 = vmatprep.subr.mxu0 0.0
    %287 = vmatpush1.msra.mxu0 0.0
    %288 = vmatprep.subr.mxu0 0.0
    %289 = vmatpush1.msra.mxu0 0.0
    %290 = vmatprep.subr.mxu0 0.0
    %291 = vmatpush1.msra.mxu0 0.0
    %292 = vmatprep.subr.mxu0 0.0
    %293 = vmatpush1.msra.mxu0 0.0
    %294 = vmatprep.mubr.f32.mxu0 0.0
    %v295 = vand.u32 %v64, 4294901760
    %296 = vmatmul.mubr.f32.gmra.mrb[0].mxu0 %v295
    %v297 = vpop.f32.mrb[0].mxu0
    %v298 = vadd.f32 %v157, %v297
    %v299 = vpop.f32.mrb[0].mxu0
    %300 = vmatprep.mubr.f32.mxu0 0.0
    %v301 = vand.u32 %v67, 4294901760
    %302 = vmatmul.mubr.f32.gmra.mrb[0].mxu0 %v301
    %v303 = vpop.f32.mrb[0].mxu0
    %v304 = vadd.f32 %v167, %v303
    %v305 = vpop.f32.mrb[0].mxu0
    %306 = vmatprep.mubr.f32.mxu0 0.0
    %v307 = vand.u32 %v70, 4294901760
    %308 = vmatmul.mubr.f32.gmra.mrb[0].mxu0 %v307
    %v309 = vpop.f32.mrb[0].mxu0
    %v310 = vadd.f32 %v177, %v309
    %v311 = vpop.f32.mrb[0].mxu0
    %312 = vmatprep.mubr.f32.mxu0 0.0
    %v313 = vand.u32 %v73, 4294901760
    %314 = vmatmul.mubr.f32.gmra.mrb[0].mxu0 %v313
    %v315 = vpop.f32.mrb[0].mxu0
    %v316 = vadd.f32 %v187, %v315
    %v317 = vpop.f32.mrb[0].mxu0
    %318 = vmatprep.mubr.f32.mxu0 0.0
    %v319 = vand.u32 %v76, 4294901760
    %320 = vmatmul.mubr.f32.gmra.mrb[0].mxu0 %v319
    %v321 = vpop.f32.mrb[0].mxu0
    %v322 = vadd.f32 %v197, %v321
    %v323 = vpop.f32.mrb[0].mxu0
    %324 = vmatprep.mubr.f32.mxu0 0.0
    %v325 = vand.u32 %v79, 4294901760
    %326 = vmatmul.mubr.f32.gmra.mrb[0].mxu0 %v325
    %v327 = vpop.f32.mrb[0].mxu0
    %v328 = vadd.f32 %v207, %v327
    %v329 = vpop.f32.mrb[0].mxu0
    %330 = vdwg.mxu0
    %331 = vmatprep.subr.mxu0 0.0
    %v332 = vand.u32 %v52, 4294901760
    %v333 = vsub.f32 %v52, %v332
    %334 = vmatpush1.msra.mxu0 %v333
    %335 = vmatprep.subr.mxu0 0.0
    %v336 = vand.u32 %v53, 4294901760
    %v337 = vsub.f32 %v53, %v336
    %338 = vmatpush1.msra.mxu0 %v337
    %339 = vmatprep.subr.mxu0 0.0
    %v340 = vand.u32 %v54, 4294901760
    %v341 = vsub.f32 %v54, %v340
    %342 = vmatpush1.msra.mxu0 %v341
    %343 = vmatprep.subr.mxu0 0.0
    %v344 = vand.u32 %v55, 4294901760
    %v345 = vsub.f32 %v55, %v344
    %346 = vmatpush1.msra.mxu0 %v345
    %347 = vmatprep.subr.mxu0 0.0
    %348 = vmatpush1.msra.mxu0 0.0
    %349 = vmatprep.subr.mxu0 0.0
    %350 = vmatpush1.msra.mxu0 0.0
    %351 = vmatprep.subr.mxu0 0.0
    %352 = vmatpush1.msra.mxu0 0.0
    %353 = vmatprep.subr.mxu0 0.0
    %354 = vmatpush1.msra.mxu0 0.0
    %355 = vmatprep.subr.mxu0 0.0
    %356 = vmatpush1.msra.mxu0 0.0
    %357 = vmatprep.subr.mxu0 0.0
    %358 = vmatpush1.msra.mxu0 0.0
    %359 = vmatprep.subr.mxu0 0.0
    %360 = vmatpush1.msra.mxu0 0.0
    %361 = vmatprep.subr.mxu0 0.0
    %362 = vmatpush1.msra.mxu0 0.0
    %363 = vmatprep.subr.mxu0 0.0
    %364 = vmatpush1.msra.mxu0 0.0
    %365 = vmatprep.subr.mxu0 0.0
    %366 = vmatpush1.msra.mxu0 0.0
    %367 = vmatprep.subr.mxu0 0.0
    %368 = vmatpush1.msra.mxu0 0.0
    %369 = vmatprep.subr.mxu0 0.0
    %370 = vmatpush1.msra.mxu0 0.0
    %371 = vmatprep.subr.mxu0 0.0
    %372 = vmatpush1.msra.mxu0 0.0
    %373 = vmatprep.subr.mxu0 0.0
    %374 = vmatpush1.msra.mxu0 0.0
    %375 = vmatprep.subr.mxu0 0.0
    %376 = vmatpush1.msra.mxu0 0.0
    %377 = vmatprep.subr.mxu0 0.0
    %378 = vmatpush1.msra.mxu0 0.0
    %379 = vmatprep.subr.mxu0 0.0
    %380 = vmatpush1.msra.mxu0 0.0
    %381 = vmatprep.subr.mxu0 0.0
    %382 = vmatpush1.msra.mxu0 0.0
    %383 = vmatprep.subr.mxu0 0.0
    %384 = vmatpush1.msra.mxu0 0.0
    %385 = vmatprep.subr.mxu0 0.0
    %386 = vmatpush1.msra.mxu0 0.0
    %387 = vmatprep.subr.mxu0 0.0
    %388 = vmatpush1.msra.mxu0 0.0
    %389 = vmatprep.subr.mxu0 0.0
    %390 = vmatpush1.msra.mxu0 0.0
    %391 = vmatprep.subr.mxu0 0.0
    %392 = vmatpush1.msra.mxu0 0.0
    %393 = vmatprep.subr.mxu0 0.0
    %394 = vmatpush1.msra.mxu0 0.0
    %395 = vmatprep.subr.mxu0 0.0
    %396 = vmatpush1.msra.mxu0 0.0
    %397 = vmatprep.subr.mxu0 0.0
    %398 = vmatpush1.msra.mxu0 0.0
    %399 = vmatprep.subr.mxu0 0.0
    %400 = vmatpush1.msra.mxu0 0.0
    %401 = vmatprep.subr.mxu0 0.0
    %402 = vmatpush1.msra.mxu0 0.0
    %403 = vmatprep.mubr.f32.mxu0 0.0
    %v404 = vand.u32 %v64, 4294901760
    %v405 = vsub.f32 %v64, %v404
    %406 = vmatmul.mubr.f32.gmra.mrb[0].mxu0 %v405
    %v407 = vpop.f32.mrb[0].mxu0
    %v408 = vadd.f32 %v298, %v407
    %v409 = vpop.f32.mrb[0].mxu0
    %410 = vmatprep.mubr.f32.mxu0 0.0
    %v411 = vand.u32 %v67, 4294901760
    %v412 = vsub.f32 %v67, %v411
    %413 = vmatmul.mubr.f32.gmra.mrb[0].mxu0 %v412
    %v414 = vpop.f32.mrb[0].mxu0
    %v415 = vadd.f32 %v304, %v414
    %v416 = vpop.f32.mrb[0].mxu0
    %417 = vmatprep.mubr.f32.mxu0 0.0
    %v418 = vand.u32 %v70, 4294901760
    %v419 = vsub.f32 %v70, %v418
    %420 = vmatmul.mubr.f32.gmra.mrb[0].mxu0 %v419
    %v421 = vpop.f32.mrb[0].mxu0
    %v422 = vadd.f32 %v310, %v421
    %v423 = vpop.f32.mrb[0].mxu0
    %424 = vmatprep.mubr.f32.mxu0 0.0
    %v425 = vand.u32 %v73, 4294901760
    %v426 = vsub.f32 %v73, %v425
    %427 = vmatmul.mubr.f32.gmra.mrb[0].mxu0 %v426
    %v428 = vpop.f32.mrb[0].mxu0
    %v429 = vadd.f32 %v316, %v428
    %v430 = vpop.f32.mrb[0].mxu0
    %431 = vmatprep.mubr.f32.mxu0 0.0
    %v432 = vand.u32 %v76, 4294901760
    %v433 = vsub.f32 %v76, %v432
    %434 = vmatmul.mubr.f32.gmra.mrb[0].mxu0 %v433
    %v435 = vpop.f32.mrb[0].mxu0
    %v436 = vadd.f32 %v322, %v435
    %v437 = vpop.f32.mrb[0].mxu0
    %438 = vmatprep.mubr.f32.mxu0 0.0
    %v439 = vand.u32 %v79, 4294901760
    %v440 = vsub.f32 %v79, %v439
    %441 = vmatmul.mubr.f32.gmra.mrb[0].mxu0 %v440
    %v442 = vpop.f32.mrb[0].mxu0
    %v443 = vadd.f32 %v328, %v442
    %v444 = vpop.f32.mrb[0].mxu0
    %445 = vdwg.mxu0
    %446 = vmatprep.subr.mxu0 0.0
    %v447 = vand.u32 %v52, 4294901760
    %448 = vmatpush1.msra.mxu0 %v447
    %449 = vmatprep.subr.mxu0 0.0
    %v450 = vand.u32 %v53, 4294901760
    %451 = vmatpush1.msra.mxu0 %v450
    %452 = vmatprep.subr.mxu0 0.0
    %v453 = vand.u32 %v54, 4294901760
    %454 = vmatpush1.msra.mxu0 %v453
    %455 = vmatprep.subr.mxu0 0.0
    %v456 = vand.u32 %v55, 4294901760
    %457 = vmatpush1.msra.mxu0 %v456
    %458 = vmatprep.subr.mxu0 0.0
    %459 = vmatpush1.msra.mxu0 0.0
    %460 = vmatprep.subr.mxu0 0.0
    %461 = vmatpush1.msra.mxu0 0.0
    %462 = vmatprep.subr.mxu0 0.0
    %463 = vmatpush1.msra.mxu0 0.0
    %464 = vmatprep.subr.mxu0 0.0
    %465 = vmatpush1.msra.mxu0 0.0
    %466 = vmatprep.subr.mxu0 0.0
    %467 = vmatpush1.msra.mxu0 0.0
    %468 = vmatprep.subr.mxu0 0.0
    %469 = vmatpush1.msra.mxu0 0.0
    %470 = vmatprep.subr.mxu0 0.0
    %471 = vmatpush1.msra.mxu0 0.0
    %472 = vmatprep.subr.mxu0 0.0
    %473 = vmatpush1.msra.mxu0 0.0
    %474 = vmatprep.subr.mxu0 0.0
    %475 = vmatpush1.msra.mxu0 0.0
    %476 = vmatprep.subr.mxu0 0.0
    %477 = vmatpush1.msra.mxu0 0.0
    %478 = vmatprep.subr.mxu0 0.0
    %479 = vmatpush1.msra.mxu0 0.0
    %480 = vmatprep.subr.mxu0 0.0
    %481 = vmatpush1.msra.mxu0 0.0
    %482 = vmatprep.subr.mxu0 0.0
    %483 = vmatpush1.msra.mxu0 0.0
    %484 = vmatprep.subr.mxu0 0.0
    %485 = vmatpush1.msra.mxu0 0.0
    %486 = vmatprep.subr.mxu0 0.0
    %487 = vmatpush1.msra.mxu0 0.0
    %488 = vmatprep.subr.mxu0 0.0
    %489 = vmatpush1.msra.mxu0 0.0
    %490 = vmatprep.subr.mxu0 0.0
    %491 = vmatpush1.msra.mxu0 0.0
    %492 = vmatprep.subr.mxu0 0.0
    %493 = vmatpush1.msra.mxu0 0.0
    %494 = vmatprep.subr.mxu0 0.0
    %495 = vmatpush1.msra.mxu0 0.0
    %496 = vmatprep.subr.mxu0 0.0
    %497 = vmatpush1.msra.mxu0 0.0
    %498 = vmatprep.subr.mxu0 0.0
    %499 = vmatpush1.msra.mxu0 0.0
    %500 = vmatprep.subr.mxu0 0.0
    %501 = vmatpush1.msra.mxu0 0.0
    %502 = vmatprep.subr.mxu0 0.0
    %503 = vmatpush1.msra.mxu0 0.0
    %504 = vmatprep.subr.mxu0 0.0
    %505 = vmatpush1.msra.mxu0 0.0
    %506 = vmatprep.subr.mxu0 0.0
    %507 = vmatpush1.msra.mxu0 0.0
    %508 = vmatprep.subr.mxu0 0.0
    %509 = vmatpush1.msra.mxu0 0.0
    %510 = vmatprep.subr.mxu0 0.0
    %511 = vmatpush1.msra.mxu0 0.0
    %512 = vmatprep.subr.mxu0 0.0
    %513 = vmatpush1.msra.mxu0 0.0
    %514 = vmatprep.mubr.f32.mxu0 0.0
    %v515 = vand.u32 %v64, 4294901760
    %v516 = vsub.f32 %v64, %v515
    %v517 = vand.u32 %v516, 4294901760
    %518 = vmatmul.mubr.f32.gmra.mrb[0].mxu0 %v517
    %v519 = vpop.f32.mrb[0].mxu0
    %v520 = vadd.f32 %v408, %v519
    %v521 = vpop.f32.mrb[0].mxu0
    %522 = vmatprep.mubr.f32.mxu0 0.0
    %v523 = vand.u32 %v67, 4294901760
    %v524 = vsub.f32 %v67, %v523
    %v525 = vand.u32 %v524, 4294901760
    %526 = vmatmul.mubr.f32.gmra.mrb[0].mxu0 %v525
    %v527 = vpop.f32.mrb[0].mxu0
    %v528 = vadd.f32 %v415, %v527
    %v529 = vpop.f32.mrb[0].mxu0
    %530 = vmatprep.mubr.f32.mxu0 0.0
    %v531 = vand.u32 %v70, 4294901760
    %v532 = vsub.f32 %v70, %v531
    %v533 = vand.u32 %v532, 4294901760
    %534 = vmatmul.mubr.f32.gmra.mrb[0].mxu0 %v533
    %v535 = vpop.f32.mrb[0].mxu0
    %v536 = vadd.f32 %v422, %v535
    %v537 = vpop.f32.mrb[0].mxu0
    %538 = vmatprep.mubr.f32.mxu0 0.0
    %v539 = vand.u32 %v73, 4294901760
    %v540 = vsub.f32 %v73, %v539
    %v541 = vand.u32 %v540, 4294901760
    %542 = vmatmul.mubr.f32.gmra.mrb[0].mxu0 %v541
    %v543 = vpop.f32.mrb[0].mxu0
    %v544 = vadd.f32 %v429, %v543
    %v545 = vpop.f32.mrb[0].mxu0
    %546 = vmatprep.mubr.f32.mxu0 0.0
    %v547 = vand.u32 %v76, 4294901760
    %v548 = vsub.f32 %v76, %v547
    %v549 = vand.u32 %v548, 4294901760
    %550 = vmatmul.mubr.f32.gmra.mrb[0].mxu0 %v549
    %v551 = vpop.f32.mrb[0].mxu0
    %v552 = vadd.f32 %v436, %v551
    %v553 = vpop.f32.mrb[0].mxu0
    %554 = vmatprep.mubr.f32.mxu0 0.0
    %v555 = vand.u32 %v79, 4294901760
    %v556 = vsub.f32 %v79, %v555
    %v557 = vand.u32 %v556, 4294901760
    %558 = vmatmul.mubr.f32.gmra.mrb[0].mxu0 %v557
    %v559 = vpop.f32.mrb[0].mxu0
    %v560 = vadd.f32 %v443, %v559
    %v561 = vpop.f32.mrb[0].mxu0
    %562 = vdwg.mxu0
    %563 = vmatprep.subr.mxu0 0.0
    %v564 = vand.u32 %v52, 4294901760
    %v565 = vsub.f32 %v52, %v564
    %v566 = vand.u32 %v565, 4294901760
    %567 = vmatpush1.msra.mxu0 %v566
    %568 = vmatprep.subr.mxu0 0.0
    %v569 = vand.u32 %v53, 4294901760
    %v570 = vsub.f32 %v53, %v569
    %v571 = vand.u32 %v570, 4294901760
    %572 = vmatpush1.msra.mxu0 %v571
    %573 = vmatprep.subr.mxu0 0.0
    %v574 = vand.u32 %v54, 4294901760
    %v575 = vsub.f32 %v54, %v574
    %v576 = vand.u32 %v575, 4294901760
    %577 = vmatpush1.msra.mxu0 %v576
    %578 = vmatprep.subr.mxu0 0.0
    %v579 = vand.u32 %v55, 4294901760
    %v580 = vsub.f32 %v55, %v579
    %v581 = vand.u32 %v580, 4294901760
    %582 = vmatpush1.msra.mxu0 %v581
    %583 = vmatprep.subr.mxu0 0.0
    %584 = vmatpush1.msra.mxu0 0.0
    %585 = vmatprep.subr.mxu0 0.0
    %586 = vmatpush1.msra.mxu0 0.0
    %587 = vmatprep.subr.mxu0 0.0
    %588 = vmatpush1.msra.mxu0 0.0
    %589 = vmatprep.subr.mxu0 0.0
    %590 = vmatpush1.msra.mxu0 0.0
    %591 = vmatprep.subr.mxu0 0.0
    %592 = vmatpush1.msra.mxu0 0.0
    %593 = vmatprep.subr.mxu0 0.0
    %594 = vmatpush1.msra.mxu0 0.0
    %595 = vmatprep.subr.mxu0 0.0
    %596 = vmatpush1.msra.mxu0 0.0
    %597 = vmatprep.subr.mxu0 0.0
    %598 = vmatpush1.msra.mxu0 0.0
    %599 = vmatprep.subr.mxu0 0.0
    %600 = vmatpush1.msra.mxu0 0.0
    %601 = vmatprep.subr.mxu0 0.0
    %602 = vmatpush1.msra.mxu0 0.0
    %603 = vmatprep.subr.mxu0 0.0
    %604 = vmatpush1.msra.mxu0 0.0
    %605 = vmatprep.subr.mxu0 0.0
    %606 = vmatpush1.msra.mxu0 0.0
    %607 = vmatprep.subr.mxu0 0.0
    %608 = vmatpush1.msra.mxu0 0.0
    %609 = vmatprep.subr.mxu0 0.0
    %610 = vmatpush1.msra.mxu0 0.0
    %611 = vmatprep.subr.mxu0 0.0
    %612 = vmatpush1.msra.mxu0 0.0
    %613 = vmatprep.subr.mxu0 0.0
    %614 = vmatpush1.msra.mxu0 0.0
    %615 = vmatprep.subr.mxu0 0.0
    %616 = vmatpush1.msra.mxu0 0.0
    %617 = vmatprep.subr.mxu0 0.0
    %618 = vmatpush1.msra.mxu0 0.0
    %619 = vmatprep.subr.mxu0 0.0
    %620 = vmatpush1.msra.mxu0 0.0
    %621 = vmatprep.subr.mxu0 0.0
    %622 = vmatpush1.msra.mxu0 0.0
    %623 = vmatprep.subr.mxu0 0.0
    %624 = vmatpush1.msra.mxu0 0.0
    %625 = vmatprep.subr.mxu0 0.0
    %626 = vmatpush1.msra.mxu0 0.0
    %627 = vmatprep.subr.mxu0 0.0
    %628 = vmatpush1.msra.mxu0 0.0
    %629 = vmatprep.subr.mxu0 0.0
    %630 = vmatpush1.msra.mxu0 0.0
    %631 = vmatprep.subr.mxu0 0.0
    %632 = vmatpush1.msra.mxu0 0.0
    %633 = vmatprep.subr.mxu0 0.0
    %634 = vmatpush1.msra.mxu0 0.0
    %635 = vmatprep.subr.mxu0 0.0
    %636 = vmatpush1.msra.mxu0 0.0
    %637 = vmatprep.subr.mxu0 0.0
    %638 = vmatpush1.msra.mxu0 0.0
    %639 = vmatprep.mubr.f32.mxu0 0.0
    %v640 = vand.u32 %v64, 4294901760
    %641 = vmatmul.mubr.f32.gmra.mrb[0].mxu0 %v640
    %v642 = vpop.f32.mrb[0].mxu0
    %v643 = vadd.f32 %v520, %v642
    %v644 = vpop.f32.mrb[0].mxu0
    %645 = vmatprep.mubr.f32.mxu0 0.0
    %v646 = vand.u32 %v67, 4294901760
    %647 = vmatmul.mubr.f32.gmra.mrb[0].mxu0 %v646
    %v648 = vpop.f32.mrb[0].mxu0
    %v649 = vadd.f32 %v528, %v648
    %v650 = vpop.f32.mrb[0].mxu0
    %651 = vmatprep.mubr.f32.mxu0 0.0
    %v652 = vand.u32 %v70, 4294901760
    %653 = vmatmul.mubr.f32.gmra.mrb[0].mxu0 %v652
    %v654 = vpop.f32.mrb[0].mxu0
    %v655 = vadd.f32 %v536, %v654
    %v656 = vpop.f32.mrb[0].mxu0
    %657 = vmatprep.mubr.f32.mxu0 0.0
    %v658 = vand.u32 %v73, 4294901760
    %659 = vmatmul.mubr.f32.gmra.mrb[0].mxu0 %v658
    %v660 = vpop.f32.mrb[0].mxu0
    %v661 = vadd.f32 %v544, %v660
    %v662 = vpop.f32.mrb[0].mxu0
    %663 = vmatprep.mubr.f32.mxu0 0.0
    %v664 = vand.u32 %v76, 4294901760
    %665 = vmatmul.mubr.f32.gmra.mrb[0].mxu0 %v664
    %v666 = vpop.f32.mrb[0].mxu0
    %v667 = vadd.f32 %v552, %v666
    %v668 = vpop.f32.mrb[0].mxu0
    %669 = vmatprep.mubr.f32.mxu0 0.0
    %v670 = vand.u32 %v79, 4294901760
    %671 = vmatmul.mubr.f32.gmra.mrb[0].mxu0 %v670
    %v672 = vpop.f32.mrb[0].mxu0
    %v673 = vadd.f32 %v560, %v672
    %v674 = vpop.f32.mrb[0].mxu0
    %675 = vdwg.mxu0
    %676 = vmatprep.subr.mxu0 0.0
    %v677 = vand.u32 %v52, 4294901760
    %678 = vmatpush1.msra.mxu0 %v677
    %679 = vmatprep.subr.mxu0 0.0
    %v680 = vand.u32 %v53, 4294901760
    %681 = vmatpush1.msra.mxu0 %v680
    %682 = vmatprep.subr.mxu0 0.0
    %v683 = vand.u32 %v54, 4294901760
    %684 = vmatpush1.msra.mxu0 %v683
    %685 = vmatprep.subr.mxu0 0.0
    %v686 = vand.u32 %v55, 4294901760
    %687 = vmatpush1.msra.mxu0 %v686
    %688 = vmatprep.subr.mxu0 0.0
    %689 = vmatpush1.msra.mxu0 0.0
    %690 = vmatprep.subr.mxu0 0.0
    %691 = vmatpush1.msra.mxu0 0.0
    %692 = vmatprep.subr.mxu0 0.0
    %693 = vmatpush1.msra.mxu0 0.0
    %694 = vmatprep.subr.mxu0 0.0
    %695 = vmatpush1.msra.mxu0 0.0
    %696 = vmatprep.subr.mxu0 0.0
    %697 = vmatpush1.msra.mxu0 0.0
    %698 = vmatprep.subr.mxu0 0.0
    %699 = vmatpush1.msra.mxu0 0.0
    %700 = vmatprep.subr.mxu0 0.0
    %701 = vmatpush1.msra.mxu0 0.0
    %702 = vmatprep.subr.mxu0 0.0
    %703 = vmatpush1.msra.mxu0 0.0
    %704 = vmatprep.subr.mxu0 0.0
    %705 = vmatpush1.msra.mxu0 0.0
    %706 = vmatprep.subr.mxu0 0.0
    %707 = vmatpush1.msra.mxu0 0.0
    %708 = vmatprep.subr.mxu0 0.0
    %709 = vmatpush1.msra.mxu0 0.0
    %710 = vmatprep.subr.mxu0 0.0
    %711 = vmatpush1.msra.mxu0 0.0
    %712 = vmatprep.subr.mxu0 0.0
    %713 = vmatpush1.msra.mxu0 0.0
    %714 = vmatprep.subr.mxu0 0.0
    %715 = vmatpush1.msra.mxu0 0.0
    %716 = vmatprep.subr.mxu0 0.0
    %717 = vmatpush1.msra.mxu0 0.0
    %718 = vmatprep.subr.mxu0 0.0
    %719 = vmatpush1.msra.mxu0 0.0
    %720 = vmatprep.subr.mxu0 0.0
    %721 = vmatpush1.msra.mxu0 0.0
    %722 = vmatprep.subr.mxu0 0.0
    %723 = vmatpush1.msra.mxu0 0.0
    %724 = vmatprep.subr.mxu0 0.0
    %725 = vmatpush1.msra.mxu0 0.0
    %726 = vmatprep.subr.mxu0 0.0
    %727 = vmatpush1.msra.mxu0 0.0
    %728 = vmatprep.subr.mxu0 0.0
    %729 = vmatpush1.msra.mxu0 0.0
    %730 = vmatprep.subr.mxu0 0.0
    %731 = vmatpush1.msra.mxu0 0.0
    %732 = vmatprep.subr.mxu0 0.0
    %733 = vmatpush1.msra.mxu0 0.0
    %734 = vmatprep.subr.mxu0 0.0
    %735 = vmatpush1.msra.mxu0 0.0
    %736 = vmatprep.subr.mxu0 0.0
    %737 = vmatpush1.msra.mxu0 0.0
    %738 = vmatprep.subr.mxu0 0.0
    %739 = vmatpush1.msra.mxu0 0.0
    %740 = vmatprep.subr.mxu0 0.0
    %741 = vmatpush1.msra.mxu0 0.0
    %742 = vmatprep.subr.mxu0 0.0
    %743 = vmatpush1.msra.mxu0 0.0
    %744 = vmatprep.mubr.f32.mxu0 0.0
    %v745 = vand.u32 %v64, 4294901760
    %746 = vmatmul.mubr.f32.gmra.mrb[0].mxu0 %v745
    %v747 = vpop.f32.mrb[0].mxu0
    %v748 = vadd.f32 %v643, %v747
    %v749 = vpop.f32.mrb[0].mxu0
    %750 = vmatprep.mubr.f32.mxu0 0.0
    %v751 = vand.u32 %v67, 4294901760
    %752 = vmatmul.mubr.f32.gmra.mrb[0].mxu0 %v751
    %v753 = vpop.f32.mrb[0].mxu0
    %v754 = vadd.f32 %v649, %v753
    %v755 = vpop.f32.mrb[0].mxu0
    %756 = vmatprep.mubr.f32.mxu0 0.0
    %v757 = vand.u32 %v70, 4294901760
    %758 = vmatmul.mubr.f32.gmra.mrb[0].mxu0 %v757
    %v759 = vpop.f32.mrb[0].mxu0
    %v760 = vadd.f32 %v655, %v759
    %v761 = vpop.f32.mrb[0].mxu0
    %762 = vmatprep.mubr.f32.mxu0 0.0
    %v763 = vand.u32 %v73, 4294901760
    %764 = vmatmul.mubr.f32.gmra.mrb[0].mxu0 %v763
    %v765 = vpop.f32.mrb[0].mxu0
    %v766 = vadd.f32 %v661, %v765
    %v767 = vpop.f32.mrb[0].mxu0
    %768 = vmatprep.mubr.f32.mxu0 0.0
    %v769 = vand.u32 %v76, 4294901760
    %770 = vmatmul.mubr.f32.gmra.mrb[0].mxu0 %v769
    %v771 = vpop.f32.mrb[0].mxu0
    %v772 = vadd.f32 %v667, %v771
    %v773 = vpop.f32.mrb[0].mxu0
    %774 = vmatprep.mubr.f32.mxu0 0.0
    %v775 = vand.u32 %v79, 4294901760
    %776 = vmatmul.mubr.f32.gmra.mrb[0].mxu0 %v775
    %v777 = vpop.f32.mrb[0].mxu0
    %v778 = vadd.f32 %v673, %v777
    %v779 = vpop.f32.mrb[0].mxu0
    %780 = vdwg.mxu0
    %v781 = vld [vmem:[%s5] sm:$0xff]
    %v782 = vld [vmem:[%s5 + $0x8] sm:$0xff]
    %v783 = vld [vmem:[%s5 + $0x10] sm:$0xff]
    %v784 = vld [vmem:[%s5 + $0x18] sm:$0xff]
    %v785 = vld [vmem:[%s5 + $0x20] sm:$0xff]
    %v786 = vld [vmem:[%s5 + $0x28] sm:$0xff]
    %v787 = vld [vmem:[%s5 + $0x30] sm:$0xff]
    %v788 = vld [vmem:[%s5 + $0x38] sm:$0xff]
    %v789 = vld [vmem:[%s5 + $0x40] sm:$0xff]
    %v790 = vld [vmem:[%s5 + $0x48] sm:$0xff]
    %792 = vset.pattern.permute.xlu0 0
    %793 = vperm.xlu0 %792, %v781
    %v794 = vpop.permute.xlu0 %793
    %797 = vset.pattern.permute.xlu0 0
    %798 = vperm.xlu0 %797, %v782
    %v799 = vpop.permute.xlu0 %798
    %v801 = vadd.f32 %v748, %v794
    %v802 = vadd.f32 %v754, %v799
    %v803 = vmax.f32 %v801, 0.0
    %v804 = vmax.f32 %v802, 0.0
    %v805 = vld [vmem:[%s1] sm:$0xff]
    %v806 = vld [vmem:[%s1 + $0x8] sm:$0xff]
    %v807 = vld [vmem:[%s1 + $0x10] sm:$0xff]
    %v808 = vld [vmem:[%s1 + $0x18] sm:$0xff]
    %v809 = vld [vmem:[%s1 + $0x20] sm:$0xff]
    %v810 = vld [vmem:[%s1 + $0x28] sm:$0xff]
    %v811 = vld [vmem:[%s1 + $0x30] sm:$0xff]
    %v812 = vld [vmem:[%s1 + $0x38] sm:$0xff]
    %v813 = vld [vmem:[%s1 + $0x40] sm:$0xff]
    %v814 = vld [vmem:[%s1 + $0x48] sm:$0xff]
    %v815 = vld [vmem:[%s1 + $0x50] sm:$0xff]
    %v816 = vld [vmem:[%s1 + $0x58] sm:$0xff]
    %v817 = vld [vmem:[%s1 + $0x60] sm:$0xff]
    %v818 = vld [vmem:[%s1 + $0x68] sm:$0xff]
    %v819 = vld [vmem:[%s1 + $0x70] sm:$0xff]
    %v820 = vld [vmem:[%s1 + $0x78] sm:$0xff]
    %v821 = vld [vmem:[#allocation2] sm:$0xff]
    %v822 = vld [vmem:[#allocation2 + $0x8] sm:$0xff]
    %v823 = vld [vmem:[#allocation2 + $0x10] sm:$0xff]
    %v824 = vld [vmem:[#allocation2 + $0x18] sm:$0xff]
    %v825 = vld [vmem:[#allocation2 + $0x20] sm:$0xff]
    %v826 = vld [vmem:[#allocation2 + $0x28] sm:$0xff]
    %v827 = vld [vmem:[#allocation2 + $0x30] sm:$0xff]
    %v828 = vld [vmem:[#allocation2 + $0x38] sm:$0xff]
    %v829 = vld [vmem:[#allocation2 + $0x40] sm:$0xff]
    %v830 = vld [vmem:[#allocation2 + $0x48] sm:$0xff]
    %v831 = vld [vmem:[#allocation2 + $0x50] sm:$0xff]
    %v832 = vld [vmem:[#allocation2 + $0x58] sm:$0xff]
    %v833 = vld [vmem:[#allocation2 + $0x60] sm:$0xff]
    %v834 = vld [vmem:[#allocation2 + $0x68] sm:$0xff]
    %v835 = vld [vmem:[#allocation2 + $0x70] sm:$0xff]
    %v836 = vld [vmem:[#allocation2 + $0x78] sm:$0xff]
    %838 = vset.pattern.permute.xlu0 0
    %839 = vperm.xlu0 %838, %v783
    %v840 = vpop.permute.xlu0 %839
    %843 = vset.pattern.permute.xlu0 0
    %844 = vperm.xlu0 %843, %v784
    %v845 = vpop.permute.xlu0 %844
    %847 = vmatprep.subr.mxu0 0.0
    %v848 = vand.u32 %v805, 4294901760
    %849 = vmatpush1.msra.mxu0 %v848
    %850 = vmatprep.subr.mxu0 0.0
    %v851 = vand.u32 %v806, 4294901760
    %852 = vmatpush1.msra.mxu0 %v851
    %853 = vmatprep.subr.mxu0 0.0
    %v854 = vand.u32 %v807, 4294901760
    %855 = vmatpush1.msra.mxu0 %v854
    %856 = vmatprep.subr.mxu0 0.0
    %v857 = vand.u32 %v808, 4294901760
    %858 = vmatpush1.msra.mxu0 %v857
    %859 = vmatprep.subr.mxu0 0.0
    %v860 = vand.u32 %v809, 4294901760
    %861 = vmatpush1.msra.mxu0 %v860
    %862 = vmatprep.subr.mxu0 0.0
    %v863 = vand.u32 %v810, 4294901760
    %864 = vmatpush1.msra.mxu0 %v863
    %865 = vmatprep.subr.mxu0 0.0
    %v866 = vand.u32 %v811, 4294901760
    %867 = vmatpush1.msra.mxu0 %v866
    %868 = vmatprep.subr.mxu0 0.0
    %v869 = vand.u32 %v812, 4294901760
    %870 = vmatpush1.msra.mxu0 %v869
    %871 = vmatprep.subr.mxu0 0.0
    %v872 = vand.u32 %v813, 4294901760
    %873 = vmatpush1.msra.mxu0 %v872
    %874 = vmatprep.subr.mxu0 0.0
    %v875 = vand.u32 %v814, 4294901760
    %876 = vmatpush1.msra.mxu0 %v875
    %877 = vmatprep.subr.mxu0 0.0
    %v878 = vand.u32 %v815, 4294901760
    %879 = vmatpush1.msra.mxu0 %v878
    %880 = vmatprep.subr.mxu0 0.0
    %v881 = vand.u32 %v816, 4294901760
    %882 = vmatpush1.msra.mxu0 %v881
    %883 = vmatprep.subr.mxu0 0.0
    %v884 = vand.u32 %v817, 4294901760
    %885 = vmatpush1.msra.mxu0 %v884
    %886 = vmatprep.subr.mxu0 0.0
    %v887 = vand.u32 %v818, 4294901760
    %888 = vmatpush1.msra.mxu0 %v887
    %889 = vmatprep.subr.mxu0 0.0
    %v890 = vand.u32 %v819, 4294901760
    %891 = vmatpush1.msra.mxu0 %v890
    %892 = vmatprep.subr.mxu0 0.0
    %v893 = vand.u32 %v820, 4294901760
    %894 = vmatpush1.msra.mxu0 %v893
    %895 = vmatprep.subr.mxu0 0.0
    %896 = vmatpush1.msra.mxu0 0.0
    %897 = vmatprep.subr.mxu0 0.0
    %898 = vmatpush1.msra.mxu0 0.0
    %899 = vmatprep.subr.mxu0 0.0
    %900 = vmatpush1.msra.mxu0 0.0
    %901 = vmatprep.subr.mxu0 0.0
    %902 = vmatpush1.msra.mxu0 0.0
    %903 = vmatprep.subr.mxu0 0.0
    %904 = vmatpush1.msra.mxu0 0.0
    %905 = vmatprep.subr.mxu0 0.0
    %906 = vmatpush1.msra.mxu0 0.0
    %907 = vmatprep.subr.mxu0 0.0
    %908 = vmatpush1.msra.mxu0 0.0
    %909 = vmatprep.subr.mxu0 0.0
    %910 = vmatpush1.msra.mxu0 0.0
    %911 = vmatprep.subr.mxu0 0.0
    %912 = vmatpush1.msra.mxu0 0.0
    %913 = vmatprep.subr.mxu0 0.0
    %914 = vmatpush1.msra.mxu0 0.0
    %915 = vmatprep.subr.mxu0 0.0
    %916 = vmatpush1.msra.mxu0 0.0
    %917 = vmatprep.subr.mxu0 0.0
    %918 = vmatpush1.msra.mxu0 0.0
    %919 = vmatprep.subr.mxu0 0.0
    %920 = vmatpush1.msra.mxu0 0.0
    %921 = vmatprep.subr.mxu0 0.0
    %922 = vmatpush1.msra.mxu0 0.0
    %923 = vmatprep.subr.mxu0 0.0
    %924 = vmatpush1.msra.mxu0 0.0
    %925 = vmatprep.subr.mxu0 0.0
    %926 = vmatpush1.msra.mxu0 0.0
    %927 = vmatprep.mubr.f32.mxu0 0.0
    %v928 = vand.u32 %v760, 4294901760
    %v929 = vsub.f32 %v760, %v928
    %v930 = vand.u32 %v929, 4294901760
    %v931 = vsub.f32 %v929, %v930
    %v932 = vand.u32 %v931, 4294901760
    %933 = vmatmul.mubr.f32.gmra.mrb[0].mxu0 %v932
    %v934 = vpop.f32.mrb[0].mxu0
    %v935 = vadd.f32 %v840, %v934
    %v936 = vpop.f32.mrb[0].mxu0
    %937 = vmatprep.mubr.f32.mxu0 0.0
    %v938 = vand.u32 %v766, 4294901760
    %v939 = vsub.f32 %v766, %v938
    %v940 = vand.u32 %v939, 4294901760
    %v941 = vsub.f32 %v939, %v940
    %v942 = vand.u32 %v941, 4294901760
    %943 = vmatmul.mubr.f32.gmra.mrb[0].mxu0 %v942
    %v944 = vpop.f32.mrb[0].mxu0
    %v945 = vadd.f32 %v845, %v944
    %v946 = vpop.f32.mrb[0].mxu0
    %947 = vdwg.mxu0
    %948 = vmatprep.subr.mxu0 0.0
    %v949 = vand.u32 %v805, 4294901760
    %v950 = vsub.f32 %v805, %v949
    %v951 = vand.u32 %v950, 4294901760
    %v952 = vsub.f32 %v950, %v951
    %v953 = vand.u32 %v952, 4294901760
    %954 = vmatpush1.msra.mxu0 %v953
    %955 = vmatprep.subr.mxu0 0.0
    %v956 = vand.u32 %v806, 4294901760
    %v957 = vsub.f32 %v806, %v956
    %v958 = vand.u32 %v957, 4294901760
    %v959 = vsub.f32 %v957, %v958
    %v960 = vand.u32 %v959, 4294901760
    %961 = vmatpush1.msra.mxu0 %v960
    %962 = vmatprep.subr.mxu0 0.0
    %v963 = vand.u32 %v807, 4294901760
    %v964 = vsub.f32 %v807, %v963
    %v965 = vand.u32 %v964, 4294901760
    %v966 = vsub.f32 %v964, %v965
    %v967 = vand.u32 %v966, 4294901760
    %968 = vmatpush1.msra.mxu0 %v967
    %969 = vmatprep.subr.mxu0 0.0
    %v970 = vand.u32 %v808, 4294901760
    %v971 = vsub.f32 %v808, %v970
    %v972 = vand.u32 %v971, 4294901760
    %v973 = vsub.f32 %v971, %v972
    %v974 = vand.u32 %v973, 4294901760
    %975 = vmatpush1.msra.mxu0 %v974
    %976 = vmatprep.subr.mxu0 0.0
    %v977 = vand.u32 %v809, 4294901760
    %v978 = vsub.f32 %v809, %v977
    %v979 = vand.u32 %v978, 4294901760
    %v980 = vsub.f32 %v978, %v979
    %v981 = vand.u32 %v980, 4294901760
    %982 = vmatpush1.msra.mxu0 %v981
    %983 = vmatprep.subr.mxu0 0.0
    %v984 = vand.u32 %v810, 4294901760
    %v985 = vsub.f32 %v810, %v984
    %v986 = vand.u32 %v985, 4294901760
    %v987 = vsub.f32 %v985, %v986
    %v988 = vand.u32 %v987, 4294901760
    %989 = vmatpush1.msra.mxu0 %v988
    %990 = vmatprep.subr.mxu0 0.0
    %v991 = vand.u32 %v811, 4294901760
    %v992 = vsub.f32 %v811, %v991
    %v993 = vand.u32 %v992, 4294901760
    %v994 = vsub.f32 %v992, %v993
    %v995 = vand.u32 %v994, 4294901760
    %996 = vmatpush1.msra.mxu0 %v995
    %997 = vmatprep.subr.mxu0 0.0
    %v998 = vand.u32 %v812, 4294901760
    %v999 = vsub.f32 %v812, %v998
    %v1000 = vand.u32 %v999, 4294901760
    %v1001 = vsub.f32 %v999, %v1000
    %v1002 = vand.u32 %v1001, 4294901760
    %1003 = vmatpush1.msra.mxu0 %v1002
    %1004 = vmatprep.subr.mxu0 0.0
    %v1005 = vand.u32 %v813, 4294901760
    %v1006 = vsub.f32 %v813, %v1005
    %v1007 = vand.u32 %v1006, 4294901760
    %v1008 = vsub.f32 %v1006, %v1007
    %v1009 = vand.u32 %v1008, 4294901760
    %1010 = vmatpush1.msra.mxu0 %v1009
    %1011 = vmatprep.subr.mxu0 0.0
    %v1012 = vand.u32 %v814, 4294901760
    %v1013 = vsub.f32 %v814, %v1012
    %v1014 = vand.u32 %v1013, 4294901760
    %v1015 = vsub.f32 %v1013, %v1014
    %v1016 = vand.u32 %v1015, 4294901760
    %1017 = vmatpush1.msra.mxu0 %v1016
    %1018 = vmatprep.subr.mxu0 0.0
    %v1019 = vand.u32 %v815, 4294901760
    %v1020 = vsub.f32 %v815, %v1019
    %v1021 = vand.u32 %v1020, 4294901760
    %v1022 = vsub.f32 %v1020, %v1021
    %v1023 = vand.u32 %v1022, 4294901760
    %1024 = vmatpush1.msra.mxu0 %v1023
    %1025 = vmatprep.subr.mxu0 0.0
    %v1026 = vand.u32 %v816, 4294901760
    %v1027 = vsub.f32 %v816, %v1026
    %v1028 = vand.u32 %v1027, 4294901760
    %v1029 = vsub.f32 %v1027, %v1028
    %v1030 = vand.u32 %v1029, 4294901760
    %1031 = vmatpush1.msra.mxu0 %v1030
    %1032 = vmatprep.subr.mxu0 0.0
    %v1033 = vand.u32 %v817, 4294901760
    %v1034 = vsub.f32 %v817, %v1033
    %v1035 = vand.u32 %v1034, 4294901760
    %v1036 = vsub.f32 %v1034, %v1035
    %v1037 = vand.u32 %v1036, 4294901760
    %1038 = vmatpush1.msra.mxu0 %v1037
    %1039 = vmatprep.subr.mxu0 0.0
    %v1040 = vand.u32 %v818, 4294901760
    %v1041 = vsub.f32 %v818, %v1040
    %v1042 = vand.u32 %v1041, 4294901760
    %v1043 = vsub.f32 %v1041, %v1042
    %v1044 = vand.u32 %v1043, 4294901760
    %1045 = vmatpush1.msra.mxu0 %v1044
    %1046 = vmatprep.subr.mxu0 0.0
    %v1047 = vand.u32 %v819, 4294901760
    %v1048 = vsub.f32 %v819, %v1047
    %v1049 = vand.u32 %v1048, 4294901760
    %v1050 = vsub.f32 %v1048, %v1049
    %v1051 = vand.u32 %v1050, 4294901760
    %1052 = vmatpush1.msra.mxu0 %v1051
    %1053 = vmatprep.subr.mxu0 0.0
    %v1054 = vand.u32 %v820, 4294901760
    %v1055 = vsub.f32 %v820, %v1054
    %v1056 = vand.u32 %v1055, 4294901760
    %v1057 = vsub.f32 %v1055, %v1056
    %v1058 = vand.u32 %v1057, 4294901760
    %1059 = vmatpush1.msra.mxu0 %v1058
    %1060 = vmatprep.subr.mxu0 0.0
    %1061 = vmatpush1.msra.mxu0 0.0
    %1062 = vmatprep.subr.mxu0 0.0
    %1063 = vmatpush1.msra.mxu0 0.0
    %1064 = vmatprep.subr.mxu0 0.0
    %1065 = vmatpush1.msra.mxu0 0.0
    %1066 = vmatprep.subr.mxu0 0.0
    %1067 = vmatpush1.msra.mxu0 0.0
    %1068 = vmatprep.subr.mxu0 0.0
    %1069 = vmatpush1.msra.mxu0 0.0
    %1070 = vmatprep.subr.mxu0 0.0
    %1071 = vmatpush1.msra.mxu0 0.0
    %1072 = vmatprep.subr.mxu0 0.0
    %1073 = vmatpush1.msra.mxu0 0.0
    %1074 = vmatprep.subr.mxu0 0.0
    %1075 = vmatpush1.msra.mxu0 0.0
    %1076 = vmatprep.subr.mxu0 0.0
    %1077 = vmatpush1.msra.mxu0 0.0
    %1078 = vmatprep.subr.mxu0 0.0
    %1079 = vmatpush1.msra.mxu0 0.0
    %1080 = vmatprep.subr.mxu0 0.0
    %1081 = vmatpush1.msra.mxu0 0.0
    %1082 = vmatprep.subr.mxu0 0.0
    %1083 = vmatpush1.msra.mxu0 0.0
    %1084 = vmatprep.subr.mxu0 0.0
    %1085 = vmatpush1.msra.mxu0 0.0
    %1086 = vmatprep.subr.mxu0 0.0
    %1087 = vmatpush1.msra.mxu0 0.0
    %1088 = vmatprep.subr.mxu0 0.0
    %1089 = vmatpush1.msra.mxu0 0.0
    %1090 = vmatprep.subr.mxu0 0.0
    %1091 = vmatpush1.msra.mxu0 0.0
    %1092 = vmatprep.mubr.f32.mxu0 0.0
    %v1093 = vand.u32 %v760, 4294901760
    %1094 = vmatmul.mubr.f32.gmra.mrb[0].mxu0 %v1093
    %v1095 = vpop.f32.mrb[0].mxu0
    %v1096 = vadd.f32 %v935, %v1095
    %v1097 = vpop.f32.mrb[0].mxu0
    %1098 = vmatprep.mubr.f32.mxu0 0.0
    %v1099 = vand.u32 %v766, 4294901760
    %1100 = vmatmul.mubr.f32.gmra.mrb[0].mxu0 %v1099
    %v1101 = vpop.f32.mrb[0].mxu0
    %v1102 = vadd.f32 %v945, %v1101
    %v1103 = vpop.f32.mrb[0].mxu0
    %1104 = vdwg.mxu0
    %1105 = vmatprep.subr.mxu0 0.0
    %v1106 = vand.u32 %v805, 4294901760
    %v1107 = vsub.f32 %v805, %v1106
    %1108 = vmatpush1.msra.mxu0 %v1107
    %1109 = vmatprep.subr.mxu0 0.0
    %v1110 = vand.u32 %v806, 4294901760
    %v1111 = vsub.f32 %v806, %v1110
    %1112 = vmatpush1.msra.mxu0 %v1111
    %1113 = vmatprep.subr.mxu0 0.0
    %v1114 = vand.u32 %v807, 4294901760
    %v1115 = vsub.f32 %v807, %v1114
    %1116 = vmatpush1.msra.mxu0 %v1115
    %1117 = vmatprep.subr.mxu0 0.0
    %v1118 = vand.u32 %v808, 4294901760
    %v1119 = vsub.f32 %v808, %v1118
    %1120 = vmatpush1.msra.mxu0 %v1119
    %1121 = vmatprep.subr.mxu0 0.0
    %v1122 = vand.u32 %v809, 4294901760
    %v1123 = vsub.f32 %v809, %v1122
    %1124 = vmatpush1.msra.mxu0 %v1123
    %1125 = vmatprep.subr.mxu0 0.0
    %v1126 = vand.u32 %v810, 4294901760
    %v1127 = vsub.f32 %v810, %v1126
    %1128 = vmatpush1.msra.mxu0 %v1127
    %1129 = vmatprep.subr.mxu0 0.0
    %v1130 = vand.u32 %v811, 4294901760
    %v1131 = vsub.f32 %v811, %v1130
    %1132 = vmatpush1.msra.mxu0 %v1131
    %1133 = vmatprep.subr.mxu0 0.0
    %v1134 = vand.u32 %v812, 4294901760
    %v1135 = vsub.f32 %v812, %v1134
    %1136 = vmatpush1.msra.mxu0 %v1135
    %1137 = vmatprep.subr.mxu0 0.0
    %v1138 = vand.u32 %v813, 4294901760
    %v1139 = vsub.f32 %v813, %v1138
    %1140 = vmatpush1.msra.mxu0 %v1139
    %1141 = vmatprep.subr.mxu0 0.0
    %v1142 = vand.u32 %v814, 4294901760
    %v1143 = vsub.f32 %v814, %v1142
    %1144 = vmatpush1.msra.mxu0 %v1143
    %1145 = vmatprep.subr.mxu0 0.0
    %v1146 = vand.u32 %v815, 4294901760
    %v1147 = vsub.f32 %v815, %v1146
    %1148 = vmatpush1.msra.mxu0 %v1147
    %1149 = vmatprep.subr.mxu0 0.0
    %v1150 = vand.u32 %v816, 4294901760
    %v1151 = vsub.f32 %v816, %v1150
    %1152 = vmatpush1.msra.mxu0 %v1151
    %1153 = vmatprep.subr.mxu0 0.0
    %v1154 = vand.u32 %v817, 4294901760
    %v1155 = vsub.f32 %v817, %v1154
    %1156 = vmatpush1.msra.mxu0 %v1155
    %1157 = vmatprep.subr.mxu0 0.0
    %v1158 = vand.u32 %v818, 4294901760
    %v1159 = vsub.f32 %v818, %v1158
    %1160 = vmatpush1.msra.mxu0 %v1159
    %1161 = vmatprep.subr.mxu0 0.0
    %v1162 = vand.u32 %v819, 4294901760
    %v1163 = vsub.f32 %v819, %v1162
    %1164 = vmatpush1.msra.mxu0 %v1163
    %1165 = vmatprep.subr.mxu0 0.0
    %v1166 = vand.u32 %v820, 4294901760
    %v1167 = vsub.f32 %v820, %v1166
    %1168 = vmatpush1.msra.mxu0 %v1167
    %1169 = vmatprep.subr.mxu0 0.0
    %1170 = vmatpush1.msra.mxu0 0.0
    %1171 = vmatprep.subr.mxu0 0.0
    %1172 = vmatpush1.msra.mxu0 0.0
    %1173 = vmatprep.subr.mxu0 0.0
    %1174 = vmatpush1.msra.mxu0 0.0
    %1175 = vmatprep.subr.mxu0 0.0
    %1176 = vmatpush1.msra.mxu0 0.0
    %1177 = vmatprep.subr.mxu0 0.0
    %1178 = vmatpush1.msra.mxu0 0.0
    %1179 = vmatprep.subr.mxu0 0.0
    %1180 = vmatpush1.msra.mxu0 0.0
    %1181 = vmatprep.subr.mxu0 0.0
    %1182 = vmatpush1.msra.mxu0 0.0
    %1183 = vmatprep.subr.mxu0 0.0
    %1184 = vmatpush1.msra.mxu0 0.0
    %1185 = vmatprep.subr.mxu0 0.0
    %1186 = vmatpush1.msra.mxu0 0.0
    %1187 = vmatprep.subr.mxu0 0.0
    %1188 = vmatpush1.msra.mxu0 0.0
    %1189 = vmatprep.subr.mxu0 0.0
    %1190 = vmatpush1.msra.mxu0 0.0
    %1191 = vmatprep.subr.mxu0 0.0
    %1192 = vmatpush1.msra.mxu0 0.0
    %1193 = vmatprep.subr.mxu0 0.0
    %1194 = vmatpush1.msra.mxu0 0.0
    %1195 = vmatprep.subr.mxu0 0.0
    %1196 = vmatpush1.msra.mxu0 0.0
    %1197 = vmatprep.subr.mxu0 0.0
    %1198 = vmatpush1.msra.mxu0 0.0
    %1199 = vmatprep.subr.mxu0 0.0
    %1200 = vmatpush1.msra.mxu0 0.0
    %1201 = vmatprep.mubr.f32.mxu0 0.0
    %v1202 = vand.u32 %v760, 4294901760
    %v1203 = vsub.f32 %v760, %v1202
    %1204 = vmatmul.mubr.f32.gmra.mrb[0].mxu0 %v1203
    %v1205 = vpop.f32.mrb[0].mxu0
    %v1206 = vadd.f32 %v1096, %v1205
    %v1207 = vpop.f32.mrb[0].mxu0
    %1208 = vmatprep.mubr.f32.mxu0 0.0
    %v1209 = vand.u32 %v766, 4294901760
    %v1210 = vsub.f32 %v766, %v1209
    %1211 = vmatmul.mubr.f32.gmra.mrb[0].mxu0 %v1210
    %v1212 = vpop.f32.mrb[0].mxu0
    %v1213 = vadd.f32 %v1102, %v1212
    %v1214 = vpop.f32.mrb[0].mxu0
    %1215 = vdwg.mxu0
    %1216 = vmatprep.subr.mxu0 0.0
    %v1217 = vand.u32 %v805, 4294901760
    %1218 = vmatpush1.msra.mxu0 %v1217
    %1219 = vmatprep.subr.mxu0 0.0
    %v1220 = vand.u32 %v806, 4294901760
    %1221 = vmatpush1.msra.mxu0 %v1220
    %1222 = vmatprep.subr.mxu0 0.0
    %v1223 = vand.u32 %v807, 4294901760
    %1224 = vmatpush1.msra.mxu0 %v1223
    %1225 = vmatprep.subr.mxu0 0.0
    %v1226 = vand.u32 %v808, 4294901760
    %1227 = vmatpush1.msra.mxu0 %v1226
    %1228 = vmatprep.subr.mxu0 0.0
    %v1229 = vand.u32 %v809, 4294901760
    %1230 = vmatpush1.msra.mxu0 %v1229
    %1231 = vmatprep.subr.mxu0 0.0
    %v1232 = vand.u32 %v810, 4294901760
    %1233 = vmatpush1.msra.mxu0 %v1232
    %1234 = vmatprep.subr.mxu0 0.0
    %v1235 = vand.u32 %v811, 4294901760
    %1236 = vmatpush1.msra.mxu0 %v1235
    %1237 = vmatprep.subr.mxu0 0.0
    %v1238 = vand.u32 %v812, 4294901760
    %1239 = vmatpush1.msra.mxu0 %v1238
    %1240 = vmatprep.subr.mxu0 0.0
    %v1241 = vand.u32 %v813, 4294901760
    %1242 = vmatpush1.msra.mxu0 %v1241
    %1243 = vmatprep.subr.mxu0 0.0
    %v1244 = vand.u32 %v814, 4294901760
    %1245 = vmatpush1.msra.mxu0 %v1244
    %1246 = vmatprep.subr.mxu0 0.0
    %v1247 = vand.u32 %v815, 4294901760
    %1248 = vmatpush1.msra.mxu0 %v1247
    %1249 = vmatprep.subr.mxu0 0.0
    %v1250 = vand.u32 %v816, 4294901760
    %1251 = vmatpush1.msra.mxu0 %v1250
    %1252 = vmatprep.subr.mxu0 0.0
    %v1253 = vand.u32 %v817, 4294901760
    %1254 = vmatpush1.msra.mxu0 %v1253
    %1255 = vmatprep.subr.mxu0 0.0
    %v1256 = vand.u32 %v818, 4294901760
    %1257 = vmatpush1.msra.mxu0 %v1256
    %1258 = vmatprep.subr.mxu0 0.0
    %v1259 = vand.u32 %v819, 4294901760
    %1260 = vmatpush1.msra.mxu0 %v1259
    %1261 = vmatprep.subr.mxu0 0.0
    %v1262 = vand.u32 %v820, 4294901760
    %1263 = vmatpush1.msra.mxu0 %v1262
    %1264 = vmatprep.subr.mxu0 0.0
    %1265 = vmatpush1.msra.mxu0 0.0
    %1266 = vmatprep.subr.mxu0 0.0
    %1267 = vmatpush1.msra.mxu0 0.0
    %1268 = vmatprep.subr.mxu0 0.0
    %1269 = vmatpush1.msra.mxu0 0.0
    %1270 = vmatprep.subr.mxu0 0.0
    %1271 = vmatpush1.msra.mxu0 0.0
    %1272 = vmatprep.subr.mxu0 0.0
    %1273 = vmatpush1.msra.mxu0 0.0
    %1274 = vmatprep.subr.mxu0 0.0
    %1275 = vmatpush1.msra.mxu0 0.0
    %1276 = vmatprep.subr.mxu0 0.0
    %1277 = vmatpush1.msra.mxu0 0.0
    %1278 = vmatprep.subr.mxu0 0.0
    %1279 = vmatpush1.msra.mxu0 0.0
    %1280 = vmatprep.subr.mxu0 0.0
    %1281 = vmatpush1.msra.mxu0 0.0
    %1282 = vmatprep.subr.mxu0 0.0
    %1283 = vmatpush1.msra.mxu0 0.0
    %1284 = vmatprep.subr.mxu0 0.0
    %1285 = vmatpush1.msra.mxu0 0.0
    %1286 = vmatprep.subr.mxu0 0.0
    %1287 = vmatpush1.msra.mxu0 0.0
    %1288 = vmatprep.subr.mxu0 0.0
    %1289 = vmatpush1.msra.mxu0 0.0
    %1290 = vmatprep.subr.mxu0 0.0
    %1291 = vmatpush1.msra.mxu0 0.0
    %1292 = vmatprep.subr.mxu0 0.0
    %1293 = vmatpush1.msra.mxu0 0.0
    %1294 = vmatprep.subr.mxu0 0.0
    %1295 = vmatpush1.msra.mxu0 0.0
    %1296 = vmatprep.mubr.f32.mxu0 0.0
    %v1297 = vand.u32 %v760, 4294901760
    %v1298 = vsub.f32 %v760, %v1297
    %v1299 = vand.u32 %v1298, 4294901760
    %1300 = vmatmul.mubr.f32.gmra.mrb[0].mxu0 %v1299
    %v1301 = vpop.f32.mrb[0].mxu0
    %v1302 = vadd.f32 %v1206, %v1301
    %v1303 = vpop.f32.mrb[0].mxu0
    %1304 = vmatprep.mubr.f32.mxu0 0.0
    %v1305 = vand.u32 %v766, 4294901760
    %v1306 = vsub.f32 %v766, %v1305
    %v1307 = vand.u32 %v1306, 4294901760
    %1308 = vmatmul.mubr.f32.gmra.mrb[0].mxu0 %v1307
    %v1309 = vpop.f32.mrb[0].mxu0
    %v1310 = vadd.f32 %v1213, %v1309
    %v1311 = vpop.f32.mrb[0].mxu0
    %1312 = vdwg.mxu0
    %1313 = vmatprep.subr.mxu0 0.0
    %v1314 = vand.u32 %v805, 4294901760
    %v1315 = vsub.f32 %v805, %v1314
    %v1316 = vand.u32 %v1315, 4294901760
    %1317 = vmatpush1.msra.mxu0 %v1316
    %1318 = vmatprep.subr.mxu0 0.0
    %v1319 = vand.u32 %v806, 4294901760
    %v1320 = vsub.f32 %v806, %v1319
    %v1321 = vand.u32 %v1320, 4294901760
    %1322 = vmatpush1.msra.mxu0 %v1321
    %1323 = vmatprep.subr.mxu0 0.0
    %v1324 = vand.u32 %v807, 4294901760
    %v1325 = vsub.f32 %v807, %v1324
    %v1326 = vand.u32 %v1325, 4294901760
    %1327 = vmatpush1.msra.mxu0 %v1326
    %1328 = vmatprep.subr.mxu0 0.0
    %v1329 = vand.u32 %v808, 4294901760
    %v1330 = vsub.f32 %v808, %v1329
    %v1331 = vand.u32 %v1330, 4294901760
    %1332 = vmatpush1.msra.mxu0 %v1331
    %1333 = vmatprep.subr.mxu0 0.0
    %v1334 = vand.u32 %v809, 4294901760
    %v1335 = vsub.f32 %v809, %v1334
    %v1336 = vand.u32 %v1335, 4294901760
    %1337 = vmatpush1.msra.mxu0 %v1336
    %1338 = vmatprep.subr.mxu0 0.0
    %v1339 = vand.u32 %v810, 4294901760
    %v1340 = vsub.f32 %v810, %v1339
    %v1341 = vand.u32 %v1340, 4294901760
    %1342 = vmatpush1.msra.mxu0 %v1341
    %1343 = vmatprep.subr.mxu0 0.0
    %v1344 = vand.u32 %v811, 4294901760
    %v1345 = vsub.f32 %v811, %v1344
    %v1346 = vand.u32 %v1345, 4294901760
    %1347 = vmatpush1.msra.mxu0 %v1346
    %1348 = vmatprep.subr.mxu0 0.0
    %v1349 = vand.u32 %v812, 4294901760
    %v1350 = vsub.f32 %v812, %v1349
    %v1351 = vand.u32 %v1350, 4294901760
    %1352 = vmatpush1.msra.mxu0 %v1351
    %1353 = vmatprep.subr.mxu0 0.0
    %v1354 = vand.u32 %v813, 4294901760
    %v1355 = vsub.f32 %v813, %v1354
    %v1356 = vand.u32 %v1355, 4294901760
    %1357 = vmatpush1.msra.mxu0 %v1356
    %1358 = vmatprep.subr.mxu0 0.0
    %v1359 = vand.u32 %v814, 4294901760
    %v1360 = vsub.f32 %v814, %v1359
    %v1361 = vand.u32 %v1360, 4294901760
    %1362 = vmatpush1.msra.mxu0 %v1361
    %1363 = vmatprep.subr.mxu0 0.0
    %v1364 = vand.u32 %v815, 4294901760
    %v1365 = vsub.f32 %v815, %v1364
    %v1366 = vand.u32 %v1365, 4294901760
    %1367 = vmatpush1.msra.mxu0 %v1366
    %1368 = vmatprep.subr.mxu0 0.0
    %v1369 = vand.u32 %v816, 4294901760
    %v1370 = vsub.f32 %v816, %v1369
    %v1371 = vand.u32 %v1370, 4294901760
    %1372 = vmatpush1.msra.mxu0 %v1371
    %1373 = vmatprep.subr.mxu0 0.0
    %v1374 = vand.u32 %v817, 4294901760
    %v1375 = vsub.f32 %v817, %v1374
    %v1376 = vand.u32 %v1375, 4294901760
    %1377 = vmatpush1.msra.mxu0 %v1376
    %1378 = vmatprep.subr.mxu0 0.0
    %v1379 = vand.u32 %v818, 4294901760
    %v1380 = vsub.f32 %v818, %v1379
    %v1381 = vand.u32 %v1380, 4294901760
    %1382 = vmatpush1.msra.mxu0 %v1381
    %1383 = vmatprep.subr.mxu0 0.0
    %v1384 = vand.u32 %v819, 4294901760
    %v1385 = vsub.f32 %v819, %v1384
    %v1386 = vand.u32 %v1385, 4294901760
    %1387 = vmatpush1.msra.mxu0 %v1386
    %1388 = vmatprep.subr.mxu0 0.0
    %v1389 = vand.u32 %v820, 4294901760
    %v1390 = vsub.f32 %v820, %v1389
    %v1391 = vand.u32 %v1390, 4294901760
    %1392 = vmatpush1.msra.mxu0 %v1391
    %1393 = vmatprep.subr.mxu0 0.0
    %1394 = vmatpush1.msra.mxu0 0.0
    %1395 = vmatprep.subr.mxu0 0.0
    %1396 = vmatpush1.msra.mxu0 0.0
    %1397 = vmatprep.subr.mxu0 0.0
    %1398 = vmatpush1.msra.mxu0 0.0
    %1399 = vmatprep.subr.mxu0 0.0
    %1400 = vmatpush1.msra.mxu0 0.0
    %1401 = vmatprep.subr.mxu0 0.0
    %1402 = vmatpush1.msra.mxu0 0.0
    %1403 = vmatprep.subr.mxu0 0.0
    %1404 = vmatpush1.msra.mxu0 0.0
    %1405 = vmatprep.subr.mxu0 0.0
    %1406 = vmatpush1.msra.mxu0 0.0
    %1407 = vmatprep.subr.mxu0 0.0
    %1408 = vmatpush1.msra.mxu0 0.0
    %1409 = vmatprep.subr.mxu0 0.0
    %1410 = vmatpush1.msra.mxu0 0.0
    %1411 = vmatprep.subr.mxu0 0.0
    %1412 = vmatpush1.msra.mxu0 0.0
    %1413 = vmatprep.subr.mxu0 0.0
    %1414 = vmatpush1.msra.mxu0 0.0
    %1415 = vmatprep.subr.mxu0 0.0
    %1416 = vmatpush1.msra.mxu0 0.0
    %1417 = vmatprep.subr.mxu0 0.0
    %1418 = vmatpush1.msra.mxu0 0.0
    %1419 = vmatprep.subr.mxu0 0.0
    %1420 = vmatpush1.msra.mxu0 0.0
    %1421 = vmatprep.subr.mxu0 0.0
    %1422 = vmatpush1.msra.mxu0 0.0
    %1423 = vmatprep.subr.mxu0 0.0
    %1424 = vmatpush1.msra.mxu0 0.0
    %1425 = vmatprep.mubr.f32.mxu0 0.0
    %v1426 = vand.u32 %v760, 4294901760
    %1427 = vmatmul.mubr.f32.gmra.mrb[0].mxu0 %v1426
    %v1428 = vpop.f32.mrb[0].mxu0
    %v1429 = vadd.f32 %v1302, %v1428
    %v1430 = vpop.f32.mrb[0].mxu0
    %1431 = vmatprep.mubr.f32.mxu0 0.0
    %v1432 = vand.u32 %v766, 4294901760
    %1433 = vmatmul.mubr.f32.gmra.mrb[0].mxu0 %v1432
    %v1434 = vpop.f32.mrb[0].mxu0
    %v1435 = vadd.f32 %v1310, %v1434
    %v1436 = vpop.f32.mrb[0].mxu0
    %1437 = vdwg.mxu0
    %1438 = vmatprep.subr.mxu0 0.0
    %v1439 = vand.u32 %v805, 4294901760
    %1440 = vmatpush1.msra.mxu0 %v1439
    %1441 = vmatprep.subr.mxu0 0.0
    %v1442 = vand.u32 %v806, 4294901760
    %1443 = vmatpush1.msra.mxu0 %v1442
    %1444 = vmatprep.subr.mxu0 0.0
    %v1445 = vand.u32 %v807, 4294901760
    %1446 = vmatpush1.msra.mxu0 %v1445
    %1447 = vmatprep.subr.mxu0 0.0
    %v1448 = vand.u32 %v808, 4294901760
    %1449 = vmatpush1.msra.mxu0 %v1448
    %1450 = vmatprep.subr.mxu0 0.0
    %v1451 = vand.u32 %v809, 4294901760
    %1452 = vmatpush1.msra.mxu0 %v1451
    %1453 = vmatprep.subr.mxu0 0.0
    %v1454 = vand.u32 %v810, 4294901760
    %1455 = vmatpush1.msra.mxu0 %v1454
    %1456 = vmatprep.subr.mxu0 0.0
    %v1457 = vand.u32 %v811, 4294901760
    %1458 = vmatpush1.msra.mxu0 %v1457
    %1459 = vmatprep.subr.mxu0 0.0
    %v1460 = vand.u32 %v812, 4294901760
    %1461 = vmatpush1.msra.mxu0 %v1460
    %1462 = vmatprep.subr.mxu0 0.0
    %v1463 = vand.u32 %v813, 4294901760
    %1464 = vmatpush1.msra.mxu0 %v1463
    %1465 = vmatprep.subr.mxu0 0.0
    %v1466 = vand.u32 %v814, 4294901760
    %1467 = vmatpush1.msra.mxu0 %v1466
    %1468 = vmatprep.subr.mxu0 0.0
    %v1469 = vand.u32 %v815, 4294901760
    %1470 = vmatpush1.msra.mxu0 %v1469
    %1471 = vmatprep.subr.mxu0 0.0
    %v1472 = vand.u32 %v816, 4294901760
    %1473 = vmatpush1.msra.mxu0 %v1472
    %1474 = vmatprep.subr.mxu0 0.0
    %v1475 = vand.u32 %v817, 4294901760
    %1476 = vmatpush1.msra.mxu0 %v1475
    %1477 = vmatprep.subr.mxu0 0.0
    %v1478 = vand.u32 %v818, 4294901760
    %1479 = vmatpush1.msra.mxu0 %v1478
    %1480 = vmatprep.subr.mxu0 0.0
    %v1481 = vand.u32 %v819, 4294901760
    %1482 = vmatpush1.msra.mxu0 %v1481
    %1483 = vmatprep.subr.mxu0 0.0
    %v1484 = vand.u32 %v820, 4294901760
    %1485 = vmatpush1.msra.mxu0 %v1484
    %1486 = vmatprep.subr.mxu0 0.0
    %1487 = vmatpush1.msra.mxu0 0.0
    %1488 = vmatprep.subr.mxu0 0.0
    %1489 = vmatpush1.msra.mxu0 0.0
    %1490 = vmatprep.subr.mxu0 0.0
    %1491 = vmatpush1.msra.mxu0 0.0
    %1492 = vmatprep.subr.mxu0 0.0
    %1493 = vmatpush1.msra.mxu0 0.0
    %1494 = vmatprep.subr.mxu0 0.0
    %1495 = vmatpush1.msra.mxu0 0.0
    %1496 = vmatprep.subr.mxu0 0.0
    %1497 = vmatpush1.msra.mxu0 0.0
    %1498 = vmatprep.subr.mxu0 0.0
    %1499 = vmatpush1.msra.mxu0 0.0
    %1500 = vmatprep.subr.mxu0 0.0
    %1501 = vmatpush1.msra.mxu0 0.0
    %1502 = vmatprep.subr.mxu0 0.0
    %1503 = vmatpush1.msra.mxu0 0.0
    %1504 = vmatprep.subr.mxu0 0.0
    %1505 = vmatpush1.msra.mxu0 0.0
    %1506 = vmatprep.subr.mxu0 0.0
    %1507 = vmatpush1.msra.mxu0 0.0
    %1508 = vmatprep.subr.mxu0 0.0
    %1509 = vmatpush1.msra.mxu0 0.0
    %1510 = vmatprep.subr.mxu0 0.0
    %1511 = vmatpush1.msra.mxu0 0.0
    %1512 = vmatprep.subr.mxu0 0.0
    %1513 = vmatpush1.msra.mxu0 0.0
    %1514 = vmatprep.subr.mxu0 0.0
    %1515 = vmatpush1.msra.mxu0 0.0
    %1516 = vmatprep.subr.mxu0 0.0
    %1517 = vmatpush1.msra.mxu0 0.0
    %1518 = vmatprep.mubr.f32.mxu0 0.0
    %v1519 = vand.u32 %v760, 4294901760
    %1520 = vmatmul.mubr.f32.gmra.mrb[0].mxu0 %v1519
    %v1521 = vpop.f32.mrb[0].mxu0
    %v1522 = vadd.f32 %v1429, %v1521
    %v1523 = vpop.f32.mrb[0].mxu0
    %1524 = vmatprep.mubr.f32.mxu0 0.0
    %v1525 = vand.u32 %v766, 4294901760
    %1526 = vmatmul.mubr.f32.gmra.mrb[0].mxu0 %v1525
    %v1527 = vpop.f32.mrb[0].mxu0
    %v1528 = vadd.f32 %v1435, %v1527
    %v1529 = vpop.f32.mrb[0].mxu0
    %1530 = vdwg.mxu0
    %v1531 = vmax.f32 %v1522, 0.0
    %v1532 = vmax.f32 %v1528, 0.0
    %1534 = vset.pattern.permute.xlu0 0
    %1535 = vperm.xlu0 %1534, %v785
    %v1536 = vpop.permute.xlu0 %1535
    %1539 = vset.pattern.permute.xlu0 0
    %1540 = vperm.xlu0 %1539, %v786
    %v1541 = vpop.permute.xlu0 %1540
    %1543 = vmatprep.subr.mxu0 0.0
    %v1544 = vand.u32 %v821, 4294901760
    %1545 = vmatpush1.msra.mxu0 %v1544
    %1546 = vmatprep.subr.mxu0 0.0
    %v1547 = vand.u32 %v822, 4294901760
    %1548 = vmatpush1.msra.mxu0 %v1547
    %1549 = vmatprep.subr.mxu0 0.0
    %v1550 = vand.u32 %v823, 4294901760
    %1551 = vmatpush1.msra.mxu0 %v1550
    %1552 = vmatprep.subr.mxu0 0.0
    %v1553 = vand.u32 %v824, 4294901760
    %1554 = vmatpush1.msra.mxu0 %v1553
    %1555 = vmatprep.subr.mxu0 0.0
    %v1556 = vand.u32 %v825, 4294901760
    %1557 = vmatpush1.msra.mxu0 %v1556
    %1558 = vmatprep.subr.mxu0 0.0
    %v1559 = vand.u32 %v826, 4294901760
    %1560 = vmatpush1.msra.mxu0 %v1559
    %1561 = vmatprep.subr.mxu0 0.0
    %v1562 = vand.u32 %v827, 4294901760
    %1563 = vmatpush1.msra.mxu0 %v1562
    %1564 = vmatprep.subr.mxu0 0.0
    %v1565 = vand.u32 %v828, 4294901760
    %1566 = vmatpush1.msra.mxu0 %v1565
    %1567 = vmatprep.subr.mxu0 0.0
    %v1568 = vand.u32 %v829, 4294901760
    %1569 = vmatpush1.msra.mxu0 %v1568
    %1570 = vmatprep.subr.mxu0 0.0
    %v1571 = vand.u32 %v830, 4294901760
    %1572 = vmatpush1.msra.mxu0 %v1571
    %1573 = vmatprep.subr.mxu0 0.0
    %v1574 = vand.u32 %v831, 4294901760
    %1575 = vmatpush1.msra.mxu0 %v1574
    %1576 = vmatprep.subr.mxu0 0.0
    %v1577 = vand.u32 %v832, 4294901760
    %1578 = vmatpush1.msra.mxu0 %v1577
    %1579 = vmatprep.subr.mxu0 0.0
    %v1580 = vand.u32 %v833, 4294901760
    %1581 = vmatpush1.msra.mxu0 %v1580
    %1582 = vmatprep.subr.mxu0 0.0
    %v1583 = vand.u32 %v834, 4294901760
    %1584 = vmatpush1.msra.mxu0 %v1583
    %1585 = vmatprep.subr.mxu0 0.0
    %v1586 = vand.u32 %v835, 4294901760
    %1587 = vmatpush1.msra.mxu0 %v1586
    %1588 = vmatprep.subr.mxu0 0.0
    %v1589 = vand.u32 %v836, 4294901760
    %1590 = vmatpush1.msra.mxu0 %v1589
    %1591 = vmatprep.subr.mxu0 0.0
    %1592 = vmatpush1.msra.mxu0 0.0
    %1593 = vmatprep.subr.mxu0 0.0
    %1594 = vmatpush1.msra.mxu0 0.0
    %1595 = vmatprep.subr.mxu0 0.0
    %1596 = vmatpush1.msra.mxu0 0.0
    %1597 = vmatprep.subr.mxu0 0.0
    %1598 = vmatpush1.msra.mxu0 0.0
    %1599 = vmatprep.subr.mxu0 0.0
    %1600 = vmatpush1.msra.mxu0 0.0
    %1601 = vmatprep.subr.mxu0 0.0
    %1602 = vmatpush1.msra.mxu0 0.0
    %1603 = vmatprep.subr.mxu0 0.0
    %1604 = vmatpush1.msra.mxu0 0.0
    %1605 = vmatprep.subr.mxu0 0.0
    %1606 = vmatpush1.msra.mxu0 0.0
    %1607 = vmatprep.subr.mxu0 0.0
    %1608 = vmatpush1.msra.mxu0 0.0
    %1609 = vmatprep.subr.mxu0 0.0
    %1610 = vmatpush1.msra.mxu0 0.0
    %1611 = vmatprep.subr.mxu0 0.0
    %1612 = vmatpush1.msra.mxu0 0.0
    %1613 = vmatprep.subr.mxu0 0.0
    %1614 = vmatpush1.msra.mxu0 0.0
    %1615 = vmatprep.subr.mxu0 0.0
    %1616 = vmatpush1.msra.mxu0 0.0
    %1617 = vmatprep.subr.mxu0 0.0
    %1618 = vmatpush1.msra.mxu0 0.0
    %1619 = vmatprep.subr.mxu0 0.0
    %1620 = vmatpush1.msra.mxu0 0.0
    %1621 = vmatprep.subr.mxu0 0.0
    %1622 = vmatpush1.msra.mxu0 0.0
    %1623 = vmatprep.mubr.f32.mxu0 0.0
    %v1624 = vand.u32 %v772, 4294901760
    %v1625 = vsub.f32 %v772, %v1624
    %v1626 = vand.u32 %v1625, 4294901760
    %v1627 = vsub.f32 %v1625, %v1626
    %v1628 = vand.u32 %v1627, 4294901760
    %1629 = vmatmul.mubr.f32.gmra.mrb[0].mxu0 %v1628
    %v1630 = vpop.f32.mrb[0].mxu0
    %v1631 = vadd.f32 %v1536, %v1630
    %v1632 = vpop.f32.mrb[0].mxu0
    %1633 = vmatprep.mubr.f32.mxu0 0.0
    %v1634 = vand.u32 %v778, 4294901760
    %v1635 = vsub.f32 %v778, %v1634
    %v1636 = vand.u32 %v1635, 4294901760
    %v1637 = vsub.f32 %v1635, %v1636
    %v1638 = vand.u32 %v1637, 4294901760
    %1639 = vmatmul.mubr.f32.gmra.mrb[0].mxu0 %v1638
    %v1640 = vpop.f32.mrb[0].mxu0
    %v1641 = vadd.f32 %v1541, %v1640
    %v1642 = vpop.f32.mrb[0].mxu0
    %1643 = vdwg.mxu0
    %1644 = vmatprep.subr.mxu0 0.0
    %v1645 = vand.u32 %v821, 4294901760
    %v1646 = vsub.f32 %v821, %v1645
    %v1647 = vand.u32 %v1646, 4294901760
    %v1648 = vsub.f32 %v1646, %v1647
    %v1649 = vand.u32 %v1648, 4294901760
    %1650 = vmatpush1.msra.mxu0 %v1649
    %1651 = vmatprep.subr.mxu0 0.0
    %v1652 = vand.u32 %v822, 4294901760
    %v1653 = vsub.f32 %v822, %v1652
    %v1654 = vand.u32 %v1653, 4294901760
    %v1655 = vsub.f32 %v1653, %v1654
    %v1656 = vand.u32 %v1655, 4294901760
    %1657 = vmatpush1.msra.mxu0 %v1656
    %1658 = vmatprep.subr.mxu0 0.0
    %v1659 = vand.u32 %v823, 4294901760
    %v1660 = vsub.f32 %v823, %v1659
    %v1661 = vand.u32 %v1660, 4294901760
    %v1662 = vsub.f32 %v1660, %v1661
    %v1663 = vand.u32 %v1662, 4294901760
    %1664 = vmatpush1.msra.mxu0 %v1663
    %1665 = vmatprep.subr.mxu0 0.0
    %v1666 = vand.u32 %v824, 4294901760
    %v1667 = vsub.f32 %v824, %v1666
    %v1668 = vand.u32 %v1667, 4294901760
    %v1669 = vsub.f32 %v1667, %v1668
    %v1670 = vand.u32 %v1669, 4294901760
    %1671 = vmatpush1.msra.mxu0 %v1670
    %1672 = vmatprep.subr.mxu0 0.0
    %v1673 = vand.u32 %v825, 4294901760
    %v1674 = vsub.f32 %v825, %v1673
    %v1675 = vand.u32 %v1674, 4294901760
    %v1676 = vsub.f32 %v1674, %v1675
    %v1677 = vand.u32 %v1676, 4294901760
    %1678 = vmatpush1.msra.mxu0 %v1677
    %1679 = vmatprep.subr.mxu0 0.0
    %v1680 = vand.u32 %v826, 4294901760
    %v1681 = vsub.f32 %v826, %v1680
    %v1682 = vand.u32 %v1681, 4294901760
    %v1683 = vsub.f32 %v1681, %v1682
    %v1684 = vand.u32 %v1683, 4294901760
    %1685 = vmatpush1.msra.mxu0 %v1684
    %1686 = vmatprep.subr.mxu0 0.0
    %v1687 = vand.u32 %v827, 4294901760
    %v1688 = vsub.f32 %v827, %v1687
    %v1689 = vand.u32 %v1688, 4294901760
    %v1690 = vsub.f32 %v1688, %v1689
    %v1691 = vand.u32 %v1690, 4294901760
    %1692 = vmatpush1.msra.mxu0 %v1691
    %1693 = vmatprep.subr.mxu0 0.0
    %v1694 = vand.u32 %v828, 4294901760
    %v1695 = vsub.f32 %v828, %v1694
    %v1696 = vand.u32 %v1695, 4294901760
    %v1697 = vsub.f32 %v1695, %v1696
    %v1698 = vand.u32 %v1697, 4294901760
    %1699 = vmatpush1.msra.mxu0 %v1698
    %1700 = vmatprep.subr.mxu0 0.0
    %v1701 = vand.u32 %v829, 4294901760
    %v1702 = vsub.f32 %v829, %v1701
    %v1703 = vand.u32 %v1702, 4294901760
    %v1704 = vsub.f32 %v1702, %v1703
    %v1705 = vand.u32 %v1704, 4294901760
    %1706 = vmatpush1.msra.mxu0 %v1705
    %1707 = vmatprep.subr.mxu0 0.0
    %v1708 = vand.u32 %v830, 4294901760
    %v1709 = vsub.f32 %v830, %v1708
    %v1710 = vand.u32 %v1709, 4294901760
    %v1711 = vsub.f32 %v1709, %v1710
    %v1712 = vand.u32 %v1711, 4294901760
    %1713 = vmatpush1.msra.mxu0 %v1712
    %1714 = vmatprep.subr.mxu0 0.0
    %v1715 = vand.u32 %v831, 4294901760
    %v1716 = vsub.f32 %v831, %v1715
    %v1717 = vand.u32 %v1716, 4294901760
    %v1718 = vsub.f32 %v1716, %v1717
    %v1719 = vand.u32 %v1718, 4294901760
    %1720 = vmatpush1.msra.mxu0 %v1719
    %1721 = vmatprep.subr.mxu0 0.0
    %v1722 = vand.u32 %v832, 4294901760
    %v1723 = vsub.f32 %v832, %v1722
    %v1724 = vand.u32 %v1723, 4294901760
    %v1725 = vsub.f32 %v1723, %v1724
    %v1726 = vand.u32 %v1725, 4294901760
    %1727 = vmatpush1.msra.mxu0 %v1726
    %1728 = vmatprep.subr.mxu0 0.0
    %v1729 = vand.u32 %v833, 4294901760
    %v1730 = vsub.f32 %v833, %v1729
    %v1731 = vand.u32 %v1730, 4294901760
    %v1732 = vsub.f32 %v1730, %v1731
    %v1733 = vand.u32 %v1732, 4294901760
    %1734 = vmatpush1.msra.mxu0 %v1733
    %1735 = vmatprep.subr.mxu0 0.0
    %v1736 = vand.u32 %v834, 4294901760
    %v1737 = vsub.f32 %v834, %v1736
    %v1738 = vand.u32 %v1737, 4294901760
    %v1739 = vsub.f32 %v1737, %v1738
    %v1740 = vand.u32 %v1739, 4294901760
    %1741 = vmatpush1.msra.mxu0 %v1740
    %1742 = vmatprep.subr.mxu0 0.0
    %v1743 = vand.u32 %v835, 4294901760
    %v1744 = vsub.f32 %v835, %v1743
    %v1745 = vand.u32 %v1744, 4294901760
    %v1746 = vsub.f32 %v1744, %v1745
    %v1747 = vand.u32 %v1746, 4294901760
    %1748 = vmatpush1.msra.mxu0 %v1747
    %1749 = vmatprep.subr.mxu0 0.0
    %v1750 = vand.u32 %v836, 4294901760
    %v1751 = vsub.f32 %v836, %v1750
    %v1752 = vand.u32 %v1751, 4294901760
    %v1753 = vsub.f32 %v1751, %v1752
    %v1754 = vand.u32 %v1753, 4294901760
    %1755 = vmatpush1.msra.mxu0 %v1754
    %1756 = vmatprep.subr.mxu0 0.0
    %1757 = vmatpush1.msra.mxu0 0.0
    %1758 = vmatprep.subr.mxu0 0.0
    %1759 = vmatpush1.msra.mxu0 0.0
    %1760 = vmatprep.subr.mxu0 0.0
    %1761 = vmatpush1.msra.mxu0 0.0
    %1762 = vmatprep.subr.mxu0 0.0
    %1763 = vmatpush1.msra.mxu0 0.0
    %1764 = vmatprep.subr.mxu0 0.0
    %1765 = vmatpush1.msra.mxu0 0.0
    %1766 = vmatprep.subr.mxu0 0.0
    %1767 = vmatpush1.msra.mxu0 0.0
    %1768 = vmatprep.subr.mxu0 0.0
    %1769 = vmatpush1.msra.mxu0 0.0
    %1770 = vmatprep.subr.mxu0 0.0
    %1771 = vmatpush1.msra.mxu0 0.0
    %1772 = vmatprep.subr.mxu0 0.0
    %1773 = vmatpush1.msra.mxu0 0.0
    %1774 = vmatprep.subr.mxu0 0.0
    %1775 = vmatpush1.msra.mxu0 0.0
    %1776 = vmatprep.subr.mxu0 0.0
    %1777 = vmatpush1.msra.mxu0 0.0
    %1778 = vmatprep.subr.mxu0 0.0
    %1779 = vmatpush1.msra.mxu0 0.0
    %1780 = vmatprep.subr.mxu0 0.0
    %1781 = vmatpush1.msra.mxu0 0.0
    %1782 = vmatprep.subr.mxu0 0.0
    %1783 = vmatpush1.msra.mxu0 0.0
    %1784 = vmatprep.subr.mxu0 0.0
    %1785 = vmatpush1.msra.mxu0 0.0
    %1786 = vmatprep.subr.mxu0 0.0
    %1787 = vmatpush1.msra.mxu0 0.0
    %1788 = vmatprep.mubr.f32.mxu0 0.0
    %v1789 = vand.u32 %v772, 4294901760
    %1790 = vmatmul.mubr.f32.gmra.mrb[0].mxu0 %v1789
    %v1791 = vpop.f32.mrb[0].mxu0
    %v1792 = vadd.f32 %v1631, %v1791
    %v1793 = vpop.f32.mrb[0].mxu0
    %1794 = vmatprep.mubr.f32.mxu0 0.0
    %v1795 = vand.u32 %v778, 4294901760
    %1796 = vmatmul.mubr.f32.gmra.mrb[0].mxu0 %v1795
    %v1797 = vpop.f32.mrb[0].mxu0
    %v1798 = vadd.f32 %v1641, %v1797
    %v1799 = vpop.f32.mrb[0].mxu0
    %1800 = vdwg.mxu0
    %1801 = vmatprep.subr.mxu0 0.0
    %v1802 = vand.u32 %v821, 4294901760
    %v1803 = vsub.f32 %v821, %v1802
    %1804 = vmatpush1.msra.mxu0 %v1803
    %1805 = vmatprep.subr.mxu0 0.0
    %v1806 = vand.u32 %v822, 4294901760
    %v1807 = vsub.f32 %v822, %v1806
    %1808 = vmatpush1.msra.mxu0 %v1807
    %1809 = vmatprep.subr.mxu0 0.0
    %v1810 = vand.u32 %v823, 4294901760
    %v1811 = vsub.f32 %v823, %v1810
    %1812 = vmatpush1.msra.mxu0 %v1811
    %1813 = vmatprep.subr.mxu0 0.0
    %v1814 = vand.u32 %v824, 4294901760
    %v1815 = vsub.f32 %v824, %v1814
    %1816 = vmatpush1.msra.mxu0 %v1815
    %1817 = vmatprep.subr.mxu0 0.0
    %v1818 = vand.u32 %v825, 4294901760
    %v1819 = vsub.f32 %v825, %v1818
    %1820 = vmatpush1.msra.mxu0 %v1819
    %1821 = vmatprep.subr.mxu0 0.0
    %v1822 = vand.u32 %v826, 4294901760
    %v1823 = vsub.f32 %v826, %v1822
    %1824 = vmatpush1.msra.mxu0 %v1823
    %1825 = vmatprep.subr.mxu0 0.0
    %v1826 = vand.u32 %v827, 4294901760
    %v1827 = vsub.f32 %v827, %v1826
    %1828 = vmatpush1.msra.mxu0 %v1827
    %1829 = vmatprep.subr.mxu0 0.0
    %v1830 = vand.u32 %v828, 4294901760
    %v1831 = vsub.f32 %v828, %v1830
    %1832 = vmatpush1.msra.mxu0 %v1831
    %1833 = vmatprep.subr.mxu0 0.0
    %v1834 = vand.u32 %v829, 4294901760
    %v1835 = vsub.f32 %v829, %v1834
    %1836 = vmatpush1.msra.mxu0 %v1835
    %1837 = vmatprep.subr.mxu0 0.0
    %v1838 = vand.u32 %v830, 4294901760
    %v1839 = vsub.f32 %v830, %v1838
    %1840 = vmatpush1.msra.mxu0 %v1839
    %1841 = vmatprep.subr.mxu0 0.0
    %v1842 = vand.u32 %v831, 4294901760
    %v1843 = vsub.f32 %v831, %v1842
    %1844 = vmatpush1.msra.mxu0 %v1843
    %1845 = vmatprep.subr.mxu0 0.0
    %v1846 = vand.u32 %v832, 4294901760
    %v1847 = vsub.f32 %v832, %v1846
    %1848 = vmatpush1.msra.mxu0 %v1847
    %1849 = vmatprep.subr.mxu0 0.0
    %v1850 = vand.u32 %v833, 4294901760
    %v1851 = vsub.f32 %v833, %v1850
    %1852 = vmatpush1.msra.mxu0 %v1851
    %1853 = vmatprep.subr.mxu0 0.0
    %v1854 = vand.u32 %v834, 4294901760
    %v1855 = vsub.f32 %v834, %v1854
    %1856 = vmatpush1.msra.mxu0 %v1855
    %1857 = vmatprep.subr.mxu0 0.0
    %v1858 = vand.u32 %v835, 4294901760
    %v1859 = vsub.f32 %v835, %v1858
    %1860 = vmatpush1.msra.mxu0 %v1859
    %1861 = vmatprep.subr.mxu0 0.0
    %v1862 = vand.u32 %v836, 4294901760
    %v1863 = vsub.f32 %v836, %v1862
    %1864 = vmatpush1.msra.mxu0 %v1863
    %1865 = vmatprep.subr.mxu0 0.0
    %1866 = vmatpush1.msra.mxu0 0.0
    %1867 = vmatprep.subr.mxu0 0.0
    %1868 = vmatpush1.msra.mxu0 0.0
    %1869 = vmatprep.subr.mxu0 0.0
    %1870 = vmatpush1.msra.mxu0 0.0
    %1871 = vmatprep.subr.mxu0 0.0
    %1872 = vmatpush1.msra.mxu0 0.0
    %1873 = vmatprep.subr.mxu0 0.0
    %1874 = vmatpush1.msra.mxu0 0.0
    %1875 = vmatprep.subr.mxu0 0.0
    %1876 = vmatpush1.msra.mxu0 0.0
    %1877 = vmatprep.subr.mxu0 0.0
    %1878 = vmatpush1.msra.mxu0 0.0
    %1879 = vmatprep.subr.mxu0 0.0
    %1880 = vmatpush1.msra.mxu0 0.0
    %1881 = vmatprep.subr.mxu0 0.0
    %1882 = vmatpush1.msra.mxu0 0.0
    %1883 = vmatprep.subr.mxu0 0.0
    %1884 = vmatpush1.msra.mxu0 0.0
    %1885 = vmatprep.subr.mxu0 0.0
    %1886 = vmatpush1.msra.mxu0 0.0
    %1887 = vmatprep.subr.mxu0 0.0
    %1888 = vmatpush1.msra.mxu0 0.0
    %1889 = vmatprep.subr.mxu0 0.0
    %1890 = vmatpush1.msra.mxu0 0.0
    %1891 = vmatprep.subr.mxu0 0.0
    %1892 = vmatpush1.msra.mxu0 0.0
    %1893 = vmatprep.subr.mxu0 0.0
    %1894 = vmatpush1.msra.mxu0 0.0
    %1895 = vmatprep.subr.mxu0 0.0
    %1896 = vmatpush1.msra.mxu0 0.0
    %1897 = vmatprep.mubr.f32.mxu0 0.0
    %v1898 = vand.u32 %v772, 4294901760
    %v1899 = vsub.f32 %v772, %v1898
    %1900 = vmatmul.mubr.f32.gmra.mrb[0].mxu0 %v1899
    %v1901 = vpop.f32.mrb[0].mxu0
    %v1902 = vadd.f32 %v1792, %v1901
    %v1903 = vpop.f32.mrb[0].mxu0
    %1904 = vmatprep.mubr.f32.mxu0 0.0
    %v1905 = vand.u32 %v778, 4294901760
    %v1906 = vsub.f32 %v778, %v1905
    %1907 = vmatmul.mubr.f32.gmra.mrb[0].mxu0 %v1906
    %v1908 = vpop.f32.mrb[0].mxu0
    %v1909 = vadd.f32 %v1798, %v1908
    %v1910 = vpop.f32.mrb[0].mxu0
    %1911 = vdwg.mxu0
    %1912 = vmatprep.subr.mxu0 0.0
    %v1913 = vand.u32 %v821, 4294901760
    %1914 = vmatpush1.msra.mxu0 %v1913
    %1915 = vmatprep.subr.mxu0 0.0
    %v1916 = vand.u32 %v822, 4294901760
    %1917 = vmatpush1.msra.mxu0 %v1916
    %1918 = vmatprep.subr.mxu0 0.0
    %v1919 = vand.u32 %v823, 4294901760
    %1920 = vmatpush1.msra.mxu0 %v1919
    %1921 = vmatprep.subr.mxu0 0.0
    %v1922 = vand.u32 %v824, 4294901760
    %1923 = vmatpush1.msra.mxu0 %v1922
    %1924 = vmatprep.subr.mxu0 0.0
    %v1925 = vand.u32 %v825, 4294901760
    %1926 = vmatpush1.msra.mxu0 %v1925
    %1927 = vmatprep.subr.mxu0 0.0
    %v1928 = vand.u32 %v826, 4294901760
    %1929 = vmatpush1.msra.mxu0 %v1928
    %1930 = vmatprep.subr.mxu0 0.0
    %v1931 = vand.u32 %v827, 4294901760
    %1932 = vmatpush1.msra.mxu0 %v1931
    %1933 = vmatprep.subr.mxu0 0.0
    %v1934 = vand.u32 %v828, 4294901760
    %1935 = vmatpush1.msra.mxu0 %v1934
    %1936 = vmatprep.subr.mxu0 0.0
    %v1937 = vand.u32 %v829, 4294901760
    %1938 = vmatpush1.msra.mxu0 %v1937
    %1939 = vmatprep.subr.mxu0 0.0
    %v1940 = vand.u32 %v830, 4294901760
    %1941 = vmatpush1.msra.mxu0 %v1940
    %1942 = vmatprep.subr.mxu0 0.0
    %v1943 = vand.u32 %v831, 4294901760
    %1944 = vmatpush1.msra.mxu0 %v1943
    %1945 = vmatprep.subr.mxu0 0.0
    %v1946 = vand.u32 %v832, 4294901760
    %1947 = vmatpush1.msra.mxu0 %v1946
    %1948 = vmatprep.subr.mxu0 0.0
    %v1949 = vand.u32 %v833, 4294901760
    %1950 = vmatpush1.msra.mxu0 %v1949
    %1951 = vmatprep.subr.mxu0 0.0
    %v1952 = vand.u32 %v834, 4294901760
    %1953 = vmatpush1.msra.mxu0 %v1952
    %1954 = vmatprep.subr.mxu0 0.0
    %v1955 = vand.u32 %v835, 4294901760
    %1956 = vmatpush1.msra.mxu0 %v1955
    %1957 = vmatprep.subr.mxu0 0.0
    %v1958 = vand.u32 %v836, 4294901760
    %1959 = vmatpush1.msra.mxu0 %v1958
    %1960 = vmatprep.subr.mxu0 0.0
    %1961 = vmatpush1.msra.mxu0 0.0
    %1962 = vmatprep.subr.mxu0 0.0
    %1963 = vmatpush1.msra.mxu0 0.0
    %1964 = vmatprep.subr.mxu0 0.0
    %1965 = vmatpush1.msra.mxu0 0.0
    %1966 = vmatprep.subr.mxu0 0.0
    %1967 = vmatpush1.msra.mxu0 0.0
    %1968 = vmatprep.subr.mxu0 0.0
    %1969 = vmatpush1.msra.mxu0 0.0
    %1970 = vmatprep.subr.mxu0 0.0
    %1971 = vmatpush1.msra.mxu0 0.0
    %1972 = vmatprep.subr.mxu0 0.0
    %1973 = vmatpush1.msra.mxu0 0.0
    %1974 = vmatprep.subr.mxu0 0.0
    %1975 = vmatpush1.msra.mxu0 0.0
    %1976 = vmatprep.subr.mxu0 0.0
    %1977 = vmatpush1.msra.mxu0 0.0
    %1978 = vmatprep.subr.mxu0 0.0
    %1979 = vmatpush1.msra.mxu0 0.0
    %1980 = vmatprep.subr.mxu0 0.0
    %1981 = vmatpush1.msra.mxu0 0.0
    %1982 = vmatprep.subr.mxu0 0.0
    %1983 = vmatpush1.msra.mxu0 0.0
    %1984 = vmatprep.subr.mxu0 0.0
    %1985 = vmatpush1.msra.mxu0 0.0
    %1986 = vmatprep.subr.mxu0 0.0
    %1987 = vmatpush1.msra.mxu0 0.0
    %1988 = vmatprep.subr.mxu0 0.0
    %1989 = vmatpush1.msra.mxu0 0.0
    %1990 = vmatprep.subr.mxu0 0.0
    %1991 = vmatpush1.msra.mxu0 0.0
    %1992 = vmatprep.mubr.f32.mxu0 0.0
    %v1993 = vand.u32 %v772, 4294901760
    %v1994 = vsub.f32 %v772, %v1993
    %v1995 = vand.u32 %v1994, 4294901760
    %1996 = vmatmul.mubr.f32.gmra.mrb[0].mxu0 %v1995
    %v1997 = vpop.f32.mrb[0].mxu0
    %v1998 = vadd.f32 %v1902, %v1997
    %v1999 = vpop.f32.mrb[0].mxu0
    %2000 = vmatprep.mubr.f32.mxu0 0.0
    %v2001 = vand.u32 %v778, 4294901760
    %v2002 = vsub.f32 %v778, %v2001
    %v2003 = vand.u32 %v2002, 4294901760
    %2004 = vmatmul.mubr.f32.gmra.mrb[0].mxu0 %v2003
    %v2005 = vpop.f32.mrb[0].mxu0
    %v2006 = vadd.f32 %v1909, %v2005
    %v2007 = vpop.f32.mrb[0].mxu0
    %2008 = vdwg.mxu0
    %2009 = vmatprep.subr.mxu0 0.0
    %v2010 = vand.u32 %v821, 4294901760
    %v2011 = vsub.f32 %v821, %v2010
    %v2012 = vand.u32 %v2011, 4294901760
    %2013 = vmatpush1.msra.mxu0 %v2012
    %2014 = vmatprep.subr.mxu0 0.0
    %v2015 = vand.u32 %v822, 4294901760
    %v2016 = vsub.f32 %v822, %v2015
    %v2017 = vand.u32 %v2016, 4294901760
    %2018 = vmatpush1.msra.mxu0 %v2017
    %2019 = vmatprep.subr.mxu0 0.0
    %v2020 = vand.u32 %v823, 4294901760
    %v2021 = vsub.f32 %v823, %v2020
    %v2022 = vand.u32 %v2021, 4294901760
    %2023 = vmatpush1.msra.mxu0 %v2022
    %2024 = vmatprep.subr.mxu0 0.0
    %v2025 = vand.u32 %v824, 4294901760
    %v2026 = vsub.f32 %v824, %v2025
    %v2027 = vand.u32 %v2026, 4294901760
    %2028 = vmatpush1.msra.mxu0 %v2027
    %2029 = vmatprep.subr.mxu0 0.0
    %v2030 = vand.u32 %v825, 4294901760
    %v2031 = vsub.f32 %v825, %v2030
    %v2032 = vand.u32 %v2031, 4294901760
    %2033 = vmatpush1.msra.mxu0 %v2032
    %2034 = vmatprep.subr.mxu0 0.0
    %v2035 = vand.u32 %v826, 4294901760
    %v2036 = vsub.f32 %v826, %v2035
    %v2037 = vand.u32 %v2036, 4294901760
    %2038 = vmatpush1.msra.mxu0 %v2037
    %2039 = vmatprep.subr.mxu0 0.0
    %v2040 = vand.u32 %v827, 4294901760
    %v2041 = vsub.f32 %v827, %v2040
    %v2042 = vand.u32 %v2041, 4294901760
    %2043 = vmatpush1.msra.mxu0 %v2042
    %2044 = vmatprep.subr.mxu0 0.0
    %v2045 = vand.u32 %v828, 4294901760
    %v2046 = vsub.f32 %v828, %v2045
    %v2047 = vand.u32 %v2046, 4294901760
    %2048 = vmatpush1.msra.mxu0 %v2047
    %2049 = vmatprep.subr.mxu0 0.0
    %v2050 = vand.u32 %v829, 4294901760
    %v2051 = vsub.f32 %v829, %v2050
    %v2052 = vand.u32 %v2051, 4294901760
    %2053 = vmatpush1.msra.mxu0 %v2052
    %2054 = vmatprep.subr.mxu0 0.0
    %v2055 = vand.u32 %v830, 4294901760
    %v2056 = vsub.f32 %v830, %v2055
    %v2057 = vand.u32 %v2056, 4294901760
    %2058 = vmatpush1.msra.mxu0 %v2057
    %2059 = vmatprep.subr.mxu0 0.0
    %v2060 = vand.u32 %v831, 4294901760
    %v2061 = vsub.f32 %v831, %v2060
    %v2062 = vand.u32 %v2061, 4294901760
    %2063 = vmatpush1.msra.mxu0 %v2062
    %2064 = vmatprep.subr.mxu0 0.0
    %v2065 = vand.u32 %v832, 4294901760
    %v2066 = vsub.f32 %v832, %v2065
    %v2067 = vand.u32 %v2066, 4294901760
    %2068 = vmatpush1.msra.mxu0 %v2067
    %2069 = vmatprep.subr.mxu0 0.0
    %v2070 = vand.u32 %v833, 4294901760
    %v2071 = vsub.f32 %v833, %v2070
    %v2072 = vand.u32 %v2071, 4294901760
    %2073 = vmatpush1.msra.mxu0 %v2072
    %2074 = vmatprep.subr.mxu0 0.0
    %v2075 = vand.u32 %v834, 4294901760
    %v2076 = vsub.f32 %v834, %v2075
    %v2077 = vand.u32 %v2076, 4294901760
    %2078 = vmatpush1.msra.mxu0 %v2077
    %2079 = vmatprep.subr.mxu0 0.0
    %v2080 = vand.u32 %v835, 4294901760
    %v2081 = vsub.f32 %v835, %v2080
    %v2082 = vand.u32 %v2081, 4294901760
    %2083 = vmatpush1.msra.mxu0 %v2082
    %2084 = vmatprep.subr.mxu0 0.0
    %v2085 = vand.u32 %v836, 4294901760
    %v2086 = vsub.f32 %v836, %v2085
    %v2087 = vand.u32 %v2086, 4294901760
    %2088 = vmatpush1.msra.mxu0 %v2087
    %2089 = vmatprep.subr.mxu0 0.0
    %2090 = vmatpush1.msra.mxu0 0.0
    %2091 = vmatprep.subr.mxu0 0.0
    %2092 = vmatpush1.msra.mxu0 0.0
    %2093 = vmatprep.subr.mxu0 0.0
    %2094 = vmatpush1.msra.mxu0 0.0
    %2095 = vmatprep.subr.mxu0 0.0
    %2096 = vmatpush1.msra.mxu0 0.0
    %2097 = vmatprep.subr.mxu0 0.0
    %2098 = vmatpush1.msra.mxu0 0.0
    %2099 = vmatprep.subr.mxu0 0.0
    %2100 = vmatpush1.msra.mxu0 0.0
    %2101 = vmatprep.subr.mxu0 0.0
    %2102 = vmatpush1.msra.mxu0 0.0
    %2103 = vmatprep.subr.mxu0 0.0
    %2104 = vmatpush1.msra.mxu0 0.0
    %2105 = vmatprep.subr.mxu0 0.0
    %2106 = vmatpush1.msra.mxu0 0.0
    %2107 = vmatprep.subr.mxu0 0.0
    %2108 = vmatpush1.msra.mxu0 0.0
    %2109 = vmatprep.subr.mxu0 0.0
    %2110 = vmatpush1.msra.mxu0 0.0
    %2111 = vmatprep.subr.mxu0 0.0
    %2112 = vmatpush1.msra.mxu0 0.0
    %2113 = vmatprep.subr.mxu0 0.0
    %2114 = vmatpush1.msra.mxu0 0.0
    %2115 = vmatprep.subr.mxu0 0.0
    %2116 = vmatpush1.msra.mxu0 0.0
    %2117 = vmatprep.subr.mxu0 0.0
    %2118 = vmatpush1.msra.mxu0 0.0
    %2119 = vmatprep.subr.mxu0 0.0
    %2120 = vmatpush1.msra.mxu0 0.0
    %2121 = vmatprep.mubr.f32.mxu0 0.0
    %v2122 = vand.u32 %v772, 4294901760
    %2123 = vmatmul.mubr.f32.gmra.mrb[0].mxu0 %v2122
    %v2124 = vpop.f32.mrb[0].mxu0
    %v2125 = vadd.f32 %v1998, %v2124
    %v2126 = vpop.f32.mrb[0].mxu0
    %2127 = vmatprep.mubr.f32.mxu0 0.0
    %v2128 = vand.u32 %v778, 4294901760
    %2129 = vmatmul.mubr.f32.gmra.mrb[0].mxu0 %v2128
    %v2130 = vpop.f32.mrb[0].mxu0
    %v2131 = vadd.f32 %v2006, %v2130
    %v2132 = vpop.f32.mrb[0].mxu0
    %2133 = vdwg.mxu0
    %2134 = vmatprep.subr.mxu0 0.0
    %v2135 = vand.u32 %v821, 4294901760
    %2136 = vmatpush1.msra.mxu0 %v2135
    %2137 = vmatprep.subr.mxu0 0.0
    %v2138 = vand.u32 %v822, 4294901760
    %2139 = vmatpush1.msra.mxu0 %v2138
    %2140 = vmatprep.subr.mxu0 0.0
    %v2141 = vand.u32 %v823, 4294901760
    %2142 = vmatpush1.msra.mxu0 %v2141
    %2143 = vmatprep.subr.mxu0 0.0
    %v2144 = vand.u32 %v824, 4294901760
    %2145 = vmatpush1.msra.mxu0 %v2144
    %2146 = vmatprep.subr.mxu0 0.0
    %v2147 = vand.u32 %v825, 4294901760
    %2148 = vmatpush1.msra.mxu0 %v2147
    %2149 = vmatprep.subr.mxu0 0.0
    %v2150 = vand.u32 %v826, 4294901760
    %2151 = vmatpush1.msra.mxu0 %v2150
    %2152 = vmatprep.subr.mxu0 0.0
    %v2153 = vand.u32 %v827, 4294901760
    %2154 = vmatpush1.msra.mxu0 %v2153
    %2155 = vmatprep.subr.mxu0 0.0
    %v2156 = vand.u32 %v828, 4294901760
    %2157 = vmatpush1.msra.mxu0 %v2156
    %2158 = vmatprep.subr.mxu0 0.0
    %v2159 = vand.u32 %v829, 4294901760
    %2160 = vmatpush1.msra.mxu0 %v2159
    %2161 = vmatprep.subr.mxu0 0.0
    %v2162 = vand.u32 %v830, 4294901760
    %2163 = vmatpush1.msra.mxu0 %v2162
    %2164 = vmatprep.subr.mxu0 0.0
    %v2165 = vand.u32 %v831, 4294901760
    %2166 = vmatpush1.msra.mxu0 %v2165
    %2167 = vmatprep.subr.mxu0 0.0
    %v2168 = vand.u32 %v832, 4294901760
    %2169 = vmatpush1.msra.mxu0 %v2168
    %2170 = vmatprep.subr.mxu0 0.0
    %v2171 = vand.u32 %v833, 4294901760
    %2172 = vmatpush1.msra.mxu0 %v2171
    %2173 = vmatprep.subr.mxu0 0.0
    %v2174 = vand.u32 %v834, 4294901760
    %2175 = vmatpush1.msra.mxu0 %v2174
    %2176 = vmatprep.subr.mxu0 0.0
    %v2177 = vand.u32 %v835, 4294901760
    %2178 = vmatpush1.msra.mxu0 %v2177
    %2179 = vmatprep.subr.mxu0 0.0
    %v2180 = vand.u32 %v836, 4294901760
    %2181 = vmatpush1.msra.mxu0 %v2180
    %2182 = vmatprep.subr.mxu0 0.0
    %2183 = vmatpush1.msra.mxu0 0.0
    %2184 = vmatprep.subr.mxu0 0.0
    %2185 = vmatpush1.msra.mxu0 0.0
    %2186 = vmatprep.subr.mxu0 0.0
    %2187 = vmatpush1.msra.mxu0 0.0
    %2188 = vmatprep.subr.mxu0 0.0
    %2189 = vmatpush1.msra.mxu0 0.0
    %2190 = vmatprep.subr.mxu0 0.0
    %2191 = vmatpush1.msra.mxu0 0.0
    %2192 = vmatprep.subr.mxu0 0.0
    %2193 = vmatpush1.msra.mxu0 0.0
    %2194 = vmatprep.subr.mxu0 0.0
    %2195 = vmatpush1.msra.mxu0 0.0
    %2196 = vmatprep.subr.mxu0 0.0
    %2197 = vmatpush1.msra.mxu0 0.0
    %2198 = vmatprep.subr.mxu0 0.0
    %2199 = vmatpush1.msra.mxu0 0.0
    %2200 = vmatprep.subr.mxu0 0.0
    %2201 = vmatpush1.msra.mxu0 0.0
    %2202 = vmatprep.subr.mxu0 0.0
    %2203 = vmatpush1.msra.mxu0 0.0
    %2204 = vmatprep.subr.mxu0 0.0
    %2205 = vmatpush1.msra.mxu0 0.0
    %2206 = vmatprep.subr.mxu0 0.0
    %2207 = vmatpush1.msra.mxu0 0.0
    %2208 = vmatprep.subr.mxu0 0.0
    %2209 = vmatpush1.msra.mxu0 0.0
    %2210 = vmatprep.subr.mxu0 0.0
    %2211 = vmatpush1.msra.mxu0 0.0
    %2212 = vmatprep.subr.mxu0 0.0
    %2213 = vmatpush1.msra.mxu0 0.0
    %2214 = vmatprep.mubr.f32.mxu0 0.0
    %v2215 = vand.u32 %v772, 4294901760
    %2216 = vmatmul.mubr.f32.gmra.mrb[0].mxu0 %v2215
    %v2217 = vpop.f32.mrb[0].mxu0
    %v2218 = vadd.f32 %v2125, %v2217
    %v2219 = vpop.f32.mrb[0].mxu0
    %2220 = vmatprep.mubr.f32.mxu0 0.0
    %v2221 = vand.u32 %v778, 4294901760
    %2222 = vmatmul.mubr.f32.gmra.mrb[0].mxu0 %v2221
    %v2223 = vpop.f32.mrb[0].mxu0
    %v2224 = vadd.f32 %v2131, %v2223
    %v2225 = vpop.f32.mrb[0].mxu0
    %2226 = vdwg.mxu0
    %v2227 = vmax.f32 %v2218, 0.0
    %v2228 = vmax.f32 %v2224, 0.0
    %v2229 = vld [vmem:[#allocation5] sm:$0xff]
    %v2230 = vld [vmem:[#allocation5 + $0x8] sm:$0xff]
    %v2231 = vld [vmem:[#allocation5 + $0x10] sm:$0xff]
    %v2232 = vld [vmem:[#allocation5 + $0x18] sm:$0xff]
    %2234 = vset.pattern.permute.xlu0 0
    %2235 = vperm.xlu0 %2234, %v787
    %v2236 = vpop.permute.xlu0 %2235
    %2239 = vset.pattern.permute.xlu0 0
    %2240 = vperm.xlu0 %2239, %v788
    %v2241 = vpop.permute.xlu0 %2240
    %2244 = vset.pattern.permute.xlu0 0
    %2245 = vperm.xlu0 %2244, %v789
    %v2246 = vpop.permute.xlu0 %2245
    %2249 = vset.pattern.permute.xlu0 0
    %2250 = vperm.xlu0 %2249, %v790
    %v2251 = vpop.permute.xlu0 %2250
    %vm2253 = vcmask 392192
    %v2255 = vsel %vm2253, %v2229, 0
    %v2258 = vsel %vm2253, %v2230, 0
    %v2261 = vsel %vm2253, %v2231, 0
    %v2264 = vsel %vm2253, %v2232, 0
    %2266 = vmatprep.subr.mxu0 0.0
    %v2267 = vand.u32 %v803, 4294901760
    %2268 = vmatpush1.msra.mxu0 %v2267
    %2269 = vmatprep.subr.mxu0 0.0
    %v2270 = vand.u32 %v804, 4294901760
    %2271 = vmatpush1.msra.mxu0 %v2270
    %2272 = vmatprep.subr.mxu0 0.0
    %v2273 = vand.u32 %v1531, 4294901760
    %2274 = vmatpush1.msra.mxu0 %v2273
    %2275 = vmatprep.subr.mxu0 0.0
    %v2276 = vand.u32 %v1532, 4294901760
    %2277 = vmatpush1.msra.mxu0 %v2276
    %2278 = vmatprep.subr.mxu0 0.0
    %v2279 = vand.u32 %v2227, 4294901760
    %2280 = vmatpush1.msra.mxu0 %v2279
    %2281 = vmatprep.subr.mxu0 0.0
    %v2282 = vand.u32 %v2228, 4294901760
    %2283 = vmatpush1.msra.mxu0 %v2282
    %2284 = vmatprep.subr.mxu0 0.0
    %2285 = vmatpush1.msra.mxu0 0.0
    %2286 = vmatprep.subr.mxu0 0.0
    %2287 = vmatpush1.msra.mxu0 0.0
    %2288 = vmatprep.subr.mxu0 0.0
    %2289 = vmatpush1.msra.mxu0 0.0
    %2290 = vmatprep.subr.mxu0 0.0
    %2291 = vmatpush1.msra.mxu0 0.0
    %2292 = vmatprep.subr.mxu0 0.0
    %2293 = vmatpush1.msra.mxu0 0.0
    %2294 = vmatprep.subr.mxu0 0.0
    %2295 = vmatpush1.msra.mxu0 0.0
    %2296 = vmatprep.subr.mxu0 0.0
    %2297 = vmatpush1.msra.mxu0 0.0
    %2298 = vmatprep.subr.mxu0 0.0
    %2299 = vmatpush1.msra.mxu0 0.0
    %2300 = vmatprep.subr.mxu0 0.0
    %2301 = vmatpush1.msra.mxu0 0.0
    %2302 = vmatprep.subr.mxu0 0.0
    %2303 = vmatpush1.msra.mxu0 0.0
    %2304 = vmatprep.subr.mxu0 0.0
    %2305 = vmatpush1.msra.mxu0 0.0
    %2306 = vmatprep.subr.mxu0 0.0
    %2307 = vmatpush1.msra.mxu0 0.0
    %2308 = vmatprep.subr.mxu0 0.0
    %2309 = vmatpush1.msra.mxu0 0.0
    %2310 = vmatprep.subr.mxu0 0.0
    %2311 = vmatpush1.msra.mxu0 0.0
    %2312 = vmatprep.subr.mxu0 0.0
    %2313 = vmatpush1.msra.mxu0 0.0
    %2314 = vmatprep.subr.mxu0 0.0
    %2315 = vmatpush1.msra.mxu0 0.0
    %2316 = vmatprep.subr.mxu0 0.0
    %2317 = vmatpush1.msra.mxu0 0.0
    %2318 = vmatprep.subr.mxu0 0.0
    %2319 = vmatpush1.msra.mxu0 0.0
    %2320 = vmatprep.subr.mxu0 0.0
    %2321 = vmatpush1.msra.mxu0 0.0
    %2322 = vmatprep.subr.mxu0 0.0
    %2323 = vmatpush1.msra.mxu0 0.0
    %2324 = vmatprep.subr.mxu0 0.0
    %2325 = vmatpush1.msra.mxu0 0.0
    %2326 = vmatprep.subr.mxu0 0.0
    %2327 = vmatpush1.msra.mxu0 0.0
    %2328 = vmatprep.subr.mxu0 0.0
    %2329 = vmatpush1.msra.mxu0 0.0
    %2330 = vmatprep.subr.mxu0 0.0
    %2331 = vmatpush1.msra.mxu0 0.0
    %2332 = vmatprep.subr.mxu0 0.0
    %2333 = vmatpush1.msra.mxu0 0.0
    %2334 = vmatprep.subr.mxu0 0.0
    %2335 = vmatpush1.msra.mxu0 0.0
    %2336 = vmatprep.mubr.f32.mxu0 0.0
    %v2337 = vand.u32 %v2255, 4294901760
    %v2338 = vsub.f32 %v2255, %v2337
    %v2339 = vand.u32 %v2338, 4294901760
    %v2340 = vsub.f32 %v2338, %v2339
    %v2341 = vand.u32 %v2340, 4294901760
    %2342 = vmatmul.mubr.f32.gmra.mrb[0].mxu0 %v2341
    %v2343 = vpop.f32.mrb[0].mxu0
    %v2344 = vadd.f32 %v2236, %v2343
    %v2345 = vpop.f32.mrb[0].mxu0
    %2346 = vmatprep.mubr.f32.mxu0 0.0
    %v2347 = vand.u32 %v2258, 4294901760
    %v2348 = vsub.f32 %v2258, %v2347
    %v2349 = vand.u32 %v2348, 4294901760
    %v2350 = vsub.f32 %v2348, %v2349
    %v2351 = vand.u32 %v2350, 4294901760
    %2352 = vmatmul.mubr.f32.gmra.mrb[0].mxu0 %v2351
    %v2353 = vpop.f32.mrb[0].mxu0
    %v2354 = vadd.f32 %v2241, %v2353
    %v2355 = vpop.f32.mrb[0].mxu0
    %2356 = vmatprep.mubr.f32.mxu0 0.0
    %v2357 = vand.u32 %v2261, 4294901760
    %v2358 = vsub.f32 %v2261, %v2357
    %v2359 = vand.u32 %v2358, 4294901760
    %v2360 = vsub.f32 %v2358, %v2359
    %v2361 = vand.u32 %v2360, 4294901760
    %2362 = vmatmul.mubr.f32.gmra.mrb[0].mxu0 %v2361
    %v2363 = vpop.f32.mrb[0].mxu0
    %v2364 = vadd.f32 %v2246, %v2363
    %v2365 = vpop.f32.mrb[0].mxu0
    %2366 = vmatprep.mubr.f32.mxu0 0.0
    %v2367 = vand.u32 %v2264, 4294901760
    %v2368 = vsub.f32 %v2264, %v2367
    %v2369 = vand.u32 %v2368, 4294901760
    %v2370 = vsub.f32 %v2368, %v2369
    %v2371 = vand.u32 %v2370, 4294901760
    %2372 = vmatmul.mubr.f32.gmra.mrb[0].mxu0 %v2371
    %v2373 = vpop.f32.mrb[0].mxu0
    %v2374 = vadd.f32 %v2251, %v2373
    %v2375 = vpop.f32.mrb[0].mxu0
    %2376 = vdwg.mxu0
    %2377 = vmatprep.subr.mxu0 0.0
    %v2378 = vand.u32 %v803, 4294901760
    %v2379 = vsub.f32 %v803, %v2378
    %v2380 = vand.u32 %v2379, 4294901760
    %v2381 = vsub.f32 %v2379, %v2380
    %v2382 = vand.u32 %v2381, 4294901760
    %2383 = vmatpush1.msra.mxu0 %v2382
    %2384 = vmatprep.subr.mxu0 0.0
    %v2385 = vand.u32 %v804, 4294901760
    %v2386 = vsub.f32 %v804, %v2385
    %v2387 = vand.u32 %v2386, 4294901760
    %v2388 = vsub.f32 %v2386, %v2387
    %v2389 = vand.u32 %v2388, 4294901760
    %2390 = vmatpush1.msra.mxu0 %v2389
    %2391 = vmatprep.subr.mxu0 0.0
    %v2392 = vand.u32 %v1531, 4294901760
    %v2393 = vsub.f32 %v1531, %v2392
    %v2394 = vand.u32 %v2393, 4294901760
    %v2395 = vsub.f32 %v2393, %v2394
    %v2396 = vand.u32 %v2395, 4294901760
    %2397 = vmatpush1.msra.mxu0 %v2396
    %2398 = vmatprep.subr.mxu0 0.0
    %v2399 = vand.u32 %v1532, 4294901760
    %v2400 = vsub.f32 %v1532, %v2399
    %v2401 = vand.u32 %v2400, 4294901760
    %v2402 = vsub.f32 %v2400, %v2401
    %v2403 = vand.u32 %v2402, 4294901760
    %2404 = vmatpush1.msra.mxu0 %v2403
    %2405 = vmatprep.subr.mxu0 0.0
    %v2406 = vand.u32 %v2227, 4294901760
    %v2407 = vsub.f32 %v2227, %v2406
    %v2408 = vand.u32 %v2407, 4294901760
    %v2409 = vsub.f32 %v2407, %v2408
    %v2410 = vand.u32 %v2409, 4294901760
    %2411 = vmatpush1.msra.mxu0 %v2410
    %2412 = vmatprep.subr.mxu0 0.0
    %v2413 = vand.u32 %v2228, 4294901760
    %v2414 = vsub.f32 %v2228, %v2413
    %v2415 = vand.u32 %v2414, 4294901760
    %v2416 = vsub.f32 %v2414, %v2415
    %v2417 = vand.u32 %v2416, 4294901760
    %2418 = vmatpush1.msra.mxu0 %v2417
    %2419 = vmatprep.subr.mxu0 0.0
    %2420 = vmatpush1.msra.mxu0 0.0
    %2421 = vmatprep.subr.mxu0 0.0
    %2422 = vmatpush1.msra.mxu0 0.0
    %2423 = vmatprep.subr.mxu0 0.0
    %2424 = vmatpush1.msra.mxu0 0.0
    %2425 = vmatprep.subr.mxu0 0.0
    %2426 = vmatpush1.msra.mxu0 0.0
    %2427 = vmatprep.subr.mxu0 0.0
    %2428 = vmatpush1.msra.mxu0 0.0
    %2429 = vmatprep.subr.mxu0 0.0
    %2430 = vmatpush1.msra.mxu0 0.0
    %2431 = vmatprep.subr.mxu0 0.0
    %2432 = vmatpush1.msra.mxu0 0.0
    %2433 = vmatprep.subr.mxu0 0.0
    %2434 = vmatpush1.msra.mxu0 0.0
    %2435 = vmatprep.subr.mxu0 0.0
    %2436 = vmatpush1.msra.mxu0 0.0
    %2437 = vmatprep.subr.mxu0 0.0
    %2438 = vmatpush1.msra.mxu0 0.0
    %2439 = vmatprep.subr.mxu0 0.0
    %2440 = vmatpush1.msra.mxu0 0.0
    %2441 = vmatprep.subr.mxu0 0.0
    %2442 = vmatpush1.msra.mxu0 0.0
    %2443 = vmatprep.subr.mxu0 0.0
    %2444 = vmatpush1.msra.mxu0 0.0
    %2445 = vmatprep.subr.mxu0 0.0
    %2446 = vmatpush1.msra.mxu0 0.0
    %2447 = vmatprep.subr.mxu0 0.0
    %2448 = vmatpush1.msra.mxu0 0.0
    %2449 = vmatprep.subr.mxu0 0.0
    %2450 = vmatpush1.msra.mxu0 0.0
    %2451 = vmatprep.subr.mxu0 0.0
    %2452 = vmatpush1.msra.mxu0 0.0
    %2453 = vmatprep.subr.mxu0 0.0
    %2454 = vmatpush1.msra.mxu0 0.0
    %2455 = vmatprep.subr.mxu0 0.0
    %2456 = vmatpush1.msra.mxu0 0.0
    %2457 = vmatprep.subr.mxu0 0.0
    %2458 = vmatpush1.msra.mxu0 0.0
    %2459 = vmatprep.subr.mxu0 0.0
    %2460 = vmatpush1.msra.mxu0 0.0
    %2461 = vmatprep.subr.mxu0 0.0
    %2462 = vmatpush1.msra.mxu0 0.0
    %2463 = vmatprep.subr.mxu0 0.0
    %2464 = vmatpush1.msra.mxu0 0.0
    %2465 = vmatprep.subr.mxu0 0.0
    %2466 = vmatpush1.msra.mxu0 0.0
    %2467 = vmatprep.subr.mxu0 0.0
    %2468 = vmatpush1.msra.mxu0 0.0
    %2469 = vmatprep.subr.mxu0 0.0
    %2470 = vmatpush1.msra.mxu0 0.0
    %2471 = vmatprep.mubr.f32.mxu0 0.0
    %v2472 = vand.u32 %v2255, 4294901760
    %2473 = vmatmul.mubr.f32.gmra.mrb[0].mxu0 %v2472
    %v2474 = vpop.f32.mrb[0].mxu0
    %v2475 = vadd.f32 %v2344, %v2474
    %v2476 = vpop.f32.mrb[0].mxu0
    %2477 = vmatprep.mubr.f32.mxu0 0.0
    %v2478 = vand.u32 %v2258, 4294901760
    %2479 = vmatmul.mubr.f32.gmra.mrb[0].mxu0 %v2478
    %v2480 = vpop.f32.mrb[0].mxu0
    %v2481 = vadd.f32 %v2354, %v2480
    %v2482 = vpop.f32.mrb[0].mxu0
    %2483 = vmatprep.mubr.f32.mxu0 0.0
    %v2484 = vand.u32 %v2261, 4294901760
    %2485 = vmatmul.mubr.f32.gmra.mrb[0].mxu0 %v2484
    %v2486 = vpop.f32.mrb[0].mxu0
    %v2487 = vadd.f32 %v2364, %v2486
    %v2488 = vpop.f32.mrb[0].mxu0
    %2489 = vmatprep.mubr.f32.mxu0 0.0
    %v2490 = vand.u32 %v2264, 4294901760
    %2491 = vmatmul.mubr.f32.gmra.mrb[0].mxu0 %v2490
    %v2492 = vpop.f32.mrb[0].mxu0
    %v2493 = vadd.f32 %v2374, %v2492
    %v2494 = vpop.f32.mrb[0].mxu0
    %2495 = vdwg.mxu0
    %2496 = vmatprep.subr.mxu0 0.0
    %v2497 = vand.u32 %v803, 4294901760
    %v2498 = vsub.f32 %v803, %v2497
    %2499 = vmatpush1.msra.mxu0 %v2498
    %2500 = vmatprep.subr.mxu0 0.0
    %v2501 = vand.u32 %v804, 4294901760
    %v2502 = vsub.f32 %v804, %v2501
    %2503 = vmatpush1.msra.mxu0 %v2502
    %2504 = vmatprep.subr.mxu0 0.0
    %v2505 = vand.u32 %v1531, 4294901760
    %v2506 = vsub.f32 %v1531, %v2505
    %2507 = vmatpush1.msra.mxu0 %v2506
    %2508 = vmatprep.subr.mxu0 0.0
    %v2509 = vand.u32 %v1532, 4294901760
    %v2510 = vsub.f32 %v1532, %v2509
    %2511 = vmatpush1.msra.mxu0 %v2510
    %2512 = vmatprep.subr.mxu0 0.0
    %v2513 = vand.u32 %v2227, 4294901760
    %v2514 = vsub.f32 %v2227, %v2513
    %2515 = vmatpush1.msra.mxu0 %v2514
    %2516 = vmatprep.subr.mxu0 0.0
    %v2517 = vand.u32 %v2228, 4294901760
    %v2518 = vsub.f32 %v2228, %v2517
    %2519 = vmatpush1.msra.mxu0 %v2518
    %2520 = vmatprep.subr.mxu0 0.0
    %2521 = vmatpush1.msra.mxu0 0.0
    %2522 = vmatprep.subr.mxu0 0.0
    %2523 = vmatpush1.msra.mxu0 0.0
    %2524 = vmatprep.subr.mxu0 0.0
    %2525 = vmatpush1.msra.mxu0 0.0
    %2526 = vmatprep.subr.mxu0 0.0
    %2527 = vmatpush1.msra.mxu0 0.0
    %2528 = vmatprep.subr.mxu0 0.0
    %2529 = vmatpush1.msra.mxu0 0.0
    %2530 = vmatprep.subr.mxu0 0.0
    %2531 = vmatpush1.msra.mxu0 0.0
    %2532 = vmatprep.subr.mxu0 0.0
    %2533 = vmatpush1.msra.mxu0 0.0
    %2534 = vmatprep.subr.mxu0 0.0
    %2535 = vmatpush1.msra.mxu0 0.0
    %2536 = vmatprep.subr.mxu0 0.0
    %2537 = vmatpush1.msra.mxu0 0.0
    %2538 = vmatprep.subr.mxu0 0.0
    %2539 = vmatpush1.msra.mxu0 0.0
    %2540 = vmatprep.subr.mxu0 0.0
    %2541 = vmatpush1.msra.mxu0 0.0
    %2542 = vmatprep.subr.mxu0 0.0
    %2543 = vmatpush1.msra.mxu0 0.0
    %2544 = vmatprep.subr.mxu0 0.0
    %2545 = vmatpush1.msra.mxu0 0.0
    %2546 = vmatprep.subr.mxu0 0.0
    %2547 = vmatpush1.msra.mxu0 0.0
    %2548 = vmatprep.subr.mxu0 0.0
    %2549 = vmatpush1.msra.mxu0 0.0
    %2550 = vmatprep.subr.mxu0 0.0
    %2551 = vmatpush1.msra.mxu0 0.0
    %2552 = vmatprep.subr.mxu0 0.0
    %2553 = vmatpush1.msra.mxu0 0.0
    %2554 = vmatprep.subr.mxu0 0.0
    %2555 = vmatpush1.msra.mxu0 0.0
    %2556 = vmatprep.subr.mxu0 0.0
    %2557 = vmatpush1.msra.mxu0 0.0
    %2558 = vmatprep.subr.mxu0 0.0
    %2559 = vmatpush1.msra.mxu0 0.0
    %2560 = vmatprep.subr.mxu0 0.0
    %2561 = vmatpush1.msra.mxu0 0.0
    %2562 = vmatprep.subr.mxu0 0.0
    %2563 = vmatpush1.msra.mxu0 0.0
    %2564 = vmatprep.subr.mxu0 0.0
    %2565 = vmatpush1.msra.mxu0 0.0
    %2566 = vmatprep.subr.mxu0 0.0
    %2567 = vmatpush1.msra.mxu0 0.0
    %2568 = vmatprep.subr.mxu0 0.0
    %2569 = vmatpush1.msra.mxu0 0.0
    %2570 = vmatprep.subr.mxu0 0.0
    %2571 = vmatpush1.msra.mxu0 0.0
    %2572 = vmatprep.mubr.f32.mxu0 0.0
    %v2573 = vand.u32 %v2255, 4294901760
    %v2574 = vsub.f32 %v2255, %v2573
    %2575 = vmatmul.mubr.f32.gmra.mrb[0].mxu0 %v2574
    %v2576 = vpop.f32.mrb[0].mxu0
    %v2577 = vadd.f32 %v2475, %v2576
    %v2578 = vpop.f32.mrb[0].mxu0
    %2579 = vmatprep.mubr.f32.mxu0 0.0
    %v2580 = vand.u32 %v2258, 4294901760
    %v2581 = vsub.f32 %v2258, %v2580
    %2582 = vmatmul.mubr.f32.gmra.mrb[0].mxu0 %v2581
    %v2583 = vpop.f32.mrb[0].mxu0
    %v2584 = vadd.f32 %v2481, %v2583
    %v2585 = vpop.f32.mrb[0].mxu0
    %2586 = vmatprep.mubr.f32.mxu0 0.0
    %v2587 = vand.u32 %v2261, 4294901760
    %v2588 = vsub.f32 %v2261, %v2587
    %2589 = vmatmul.mubr.f32.gmra.mrb[0].mxu0 %v2588
    %v2590 = vpop.f32.mrb[0].mxu0
    %v2591 = vadd.f32 %v2487, %v2590
    %v2592 = vpop.f32.mrb[0].mxu0
    %2593 = vmatprep.mubr.f32.mxu0 0.0
    %v2594 = vand.u32 %v2264, 4294901760
    %v2595 = vsub.f32 %v2264, %v2594
    %2596 = vmatmul.mubr.f32.gmra.mrb[0].mxu0 %v2595
    %v2597 = vpop.f32.mrb[0].mxu0
    %v2598 = vadd.f32 %v2493, %v2597
    %v2599 = vpop.f32.mrb[0].mxu0
    %2600 = vdwg.mxu0
    %2601 = vmatprep.subr.mxu0 0.0
    %v2602 = vand.u32 %v803, 4294901760
    %2603 = vmatpush1.msra.mxu0 %v2602
    %2604 = vmatprep.subr.mxu0 0.0
    %v2605 = vand.u32 %v804, 4294901760
    %2606 = vmatpush1.msra.mxu0 %v2605
    %2607 = vmatprep.subr.mxu0 0.0
    %v2608 = vand.u32 %v1531, 4294901760
    %2609 = vmatpush1.msra.mxu0 %v2608
    %2610 = vmatprep.subr.mxu0 0.0
    %v2611 = vand.u32 %v1532, 4294901760
    %2612 = vmatpush1.msra.mxu0 %v2611
    %2613 = vmatprep.subr.mxu0 0.0
    %v2614 = vand.u32 %v2227, 4294901760
    %2615 = vmatpush1.msra.mxu0 %v2614
    %2616 = vmatprep.subr.mxu0 0.0
    %v2617 = vand.u32 %v2228, 4294901760
    %2618 = vmatpush1.msra.mxu0 %v2617
    %2619 = vmatprep.subr.mxu0 0.0
    %2620 = vmatpush1.msra.mxu0 0.0
    %2621 = vmatprep.subr.mxu0 0.0
    %2622 = vmatpush1.msra.mxu0 0.0
    %2623 = vmatprep.subr.mxu0 0.0
    %2624 = vmatpush1.msra.mxu0 0.0
    %2625 = vmatprep.subr.mxu0 0.0
    %2626 = vmatpush1.msra.mxu0 0.0
    %2627 = vmatprep.subr.mxu0 0.0
    %2628 = vmatpush1.msra.mxu0 0.0
    %2629 = vmatprep.subr.mxu0 0.0
    %2630 = vmatpush1.msra.mxu0 0.0
    %2631 = vmatprep.subr.mxu0 0.0
    %2632 = vmatpush1.msra.mxu0 0.0
    %2633 = vmatprep.subr.mxu0 0.0
    %2634 = vmatpush1.msra.mxu0 0.0
    %2635 = vmatprep.subr.mxu0 0.0
    %2636 = vmatpush1.msra.mxu0 0.0
    %2637 = vmatprep.subr.mxu0 0.0
    %2638 = vmatpush1.msra.mxu0 0.0
    %2639 = vmatprep.subr.mxu0 0.0
    %2640 = vmatpush1.msra.mxu0 0.0
    %2641 = vmatprep.subr.mxu0 0.0
    %2642 = vmatpush1.msra.mxu0 0.0
    %2643 = vmatprep.subr.mxu0 0.0
    %2644 = vmatpush1.msra.mxu0 0.0
    %2645 = vmatprep.subr.mxu0 0.0
    %2646 = vmatpush1.msra.mxu0 0.0
    %2647 = vmatprep.subr.mxu0 0.0
    %2648 = vmatpush1.msra.mxu0 0.0
    %2649 = vmatprep.subr.mxu0 0.0
    %2650 = vmatpush1.msra.mxu0 0.0
    %2651 = vmatprep.subr.mxu0 0.0
    %2652 = vmatpush1.msra.mxu0 0.0
    %2653 = vmatprep.subr.mxu0 0.0
    %2654 = vmatpush1.msra.mxu0 0.0
    %2655 = vmatprep.subr.mxu0 0.0
    %2656 = vmatpush1.msra.mxu0 0.0
    %2657 = vmatprep.subr.mxu0 0.0
    %2658 = vmatpush1.msra.mxu0 0.0
    %2659 = vmatprep.subr.mxu0 0.0
    %2660 = vmatpush1.msra.mxu0 0.0
    %2661 = vmatprep.subr.mxu0 0.0
    %2662 = vmatpush1.msra.mxu0 0.0
    %2663 = vmatprep.subr.mxu0 0.0
    %2664 = vmatpush1.msra.mxu0 0.0
    %2665 = vmatprep.subr.mxu0 0.0
    %2666 = vmatpush1.msra.mxu0 0.0
    %2667 = vmatprep.subr.mxu0 0.0
    %2668 = vmatpush1.msra.mxu0 0.0
    %2669 = vmatprep.subr.mxu0 0.0
    %2670 = vmatpush1.msra.mxu0 0.0
    %2671 = vmatprep.mubr.f32.mxu0 0.0
    %v2672 = vand.u32 %v2255, 4294901760
    %v2673 = vsub.f32 %v2255, %v2672
    %v2674 = vand.u32 %v2673, 4294901760
    %2675 = vmatmul.mubr.f32.gmra.mrb[0].mxu0 %v2674
    %v2676 = vpop.f32.mrb[0].mxu0
    %v2677 = vadd.f32 %v2577, %v2676
    %v2678 = vpop.f32.mrb[0].mxu0
    %2679 = vmatprep.mubr.f32.mxu0 0.0
    %v2680 = vand.u32 %v2258, 4294901760
    %v2681 = vsub.f32 %v2258, %v2680
    %v2682 = vand.u32 %v2681, 4294901760
    %2683 = vmatmul.mubr.f32.gmra.mrb[0].mxu0 %v2682
    %v2684 = vpop.f32.mrb[0].mxu0
    %v2685 = vadd.f32 %v2584, %v2684
    %v2686 = vpop.f32.mrb[0].mxu0
    %2687 = vmatprep.mubr.f32.mxu0 0.0
    %v2688 = vand.u32 %v2261, 4294901760
    %v2689 = vsub.f32 %v2261, %v2688
    %v2690 = vand.u32 %v2689, 4294901760
    %2691 = vmatmul.mubr.f32.gmra.mrb[0].mxu0 %v2690
    %v2692 = vpop.f32.mrb[0].mxu0
    %v2693 = vadd.f32 %v2591, %v2692
    %v2694 = vpop.f32.mrb[0].mxu0
    %2695 = vmatprep.mubr.f32.mxu0 0.0
    %v2696 = vand.u32 %v2264, 4294901760
    %v2697 = vsub.f32 %v2264, %v2696
    %v2698 = vand.u32 %v2697, 4294901760
    %2699 = vmatmul.mubr.f32.gmra.mrb[0].mxu0 %v2698
    %v2700 = vpop.f32.mrb[0].mxu0
    %v2701 = vadd.f32 %v2598, %v2700
    %v2702 = vpop.f32.mrb[0].mxu0
    %2703 = vdwg.mxu0
    %2704 = vmatprep.subr.mxu0 0.0
    %v2705 = vand.u32 %v803, 4294901760
    %v2706 = vsub.f32 %v803, %v2705
    %v2707 = vand.u32 %v2706, 4294901760
    %2708 = vmatpush1.msra.mxu0 %v2707
    %2709 = vmatprep.subr.mxu0 0.0
    %v2710 = vand.u32 %v804, 4294901760
    %v2711 = vsub.f32 %v804, %v2710
    %v2712 = vand.u32 %v2711, 4294901760
    %2713 = vmatpush1.msra.mxu0 %v2712
    %2714 = vmatprep.subr.mxu0 0.0
    %v2715 = vand.u32 %v1531, 4294901760
    %v2716 = vsub.f32 %v1531, %v2715
    %v2717 = vand.u32 %v2716, 4294901760
    %2718 = vmatpush1.msra.mxu0 %v2717
    %2719 = vmatprep.subr.mxu0 0.0
    %v2720 = vand.u32 %v1532, 4294901760
    %v2721 = vsub.f32 %v1532, %v2720
    %v2722 = vand.u32 %v2721, 4294901760
    %2723 = vmatpush1.msra.mxu0 %v2722
    %2724 = vmatprep.subr.mxu0 0.0
    %v2725 = vand.u32 %v2227, 4294901760
    %v2726 = vsub.f32 %v2227, %v2725
    %v2727 = vand.u32 %v2726, 4294901760
    %2728 = vmatpush1.msra.mxu0 %v2727
    %2729 = vmatprep.subr.mxu0 0.0
    %v2730 = vand.u32 %v2228, 4294901760
    %v2731 = vsub.f32 %v2228, %v2730
    %v2732 = vand.u32 %v2731, 4294901760
    %2733 = vmatpush1.msra.mxu0 %v2732
    %2734 = vmatprep.subr.mxu0 0.0
    %2735 = vmatpush1.msra.mxu0 0.0
    %2736 = vmatprep.subr.mxu0 0.0
    %2737 = vmatpush1.msra.mxu0 0.0
    %2738 = vmatprep.subr.mxu0 0.0
    %2739 = vmatpush1.msra.mxu0 0.0
    %2740 = vmatprep.subr.mxu0 0.0
    %2741 = vmatpush1.msra.mxu0 0.0
    %2742 = vmatprep.subr.mxu0 0.0
    %2743 = vmatpush1.msra.mxu0 0.0
    %2744 = vmatprep.subr.mxu0 0.0
    %2745 = vmatpush1.msra.mxu0 0.0
    %2746 = vmatprep.subr.mxu0 0.0
    %2747 = vmatpush1.msra.mxu0 0.0
    %2748 = vmatprep.subr.mxu0 0.0
    %2749 = vmatpush1.msra.mxu0 0.0
    %2750 = vmatprep.subr.mxu0 0.0
    %2751 = vmatpush1.msra.mxu0 0.0
    %2752 = vmatprep.subr.mxu0 0.0
    %2753 = vmatpush1.msra.mxu0 0.0
    %2754 = vmatprep.subr.mxu0 0.0
    %2755 = vmatpush1.msra.mxu0 0.0
    %2756 = vmatprep.subr.mxu0 0.0
    %2757 = vmatpush1.msra.mxu0 0.0
    %2758 = vmatprep.subr.mxu0 0.0
    %2759 = vmatpush1.msra.mxu0 0.0
    %2760 = vmatprep.subr.mxu0 0.0
    %2761 = vmatpush1.msra.mxu0 0.0
    %2762 = vmatprep.subr.mxu0 0.0
    %2763 = vmatpush1.msra.mxu0 0.0
    %2764 = vmatprep.subr.mxu0 0.0
    %2765 = vmatpush1.msra.mxu0 0.0
    %2766 = vmatprep.subr.mxu0 0.0
    %2767 = vmatpush1.msra.mxu0 0.0
    %2768 = vmatprep.subr.mxu0 0.0
    %2769 = vmatpush1.msra.mxu0 0.0
    %2770 = vmatprep.subr.mxu0 0.0
    %2771 = vmatpush1.msra.mxu0 0.0
    %2772 = vmatprep.subr.mxu0 0.0
    %2773 = vmatpush1.msra.mxu0 0.0
    %2774 = vmatprep.subr.mxu0 0.0
    %2775 = vmatpush1.msra.mxu0 0.0
    %2776 = vmatprep.subr.mxu0 0.0
    %2777 = vmatpush1.msra.mxu0 0.0
    %2778 = vmatprep.subr.mxu0 0.0
    %2779 = vmatpush1.msra.mxu0 0.0
    %2780 = vmatprep.subr.mxu0 0.0
    %2781 = vmatpush1.msra.mxu0 0.0
    %2782 = vmatprep.subr.mxu0 0.0
    %2783 = vmatpush1.msra.mxu0 0.0
    %2784 = vmatprep.subr.mxu0 0.0
    %2785 = vmatpush1.msra.mxu0 0.0
    %2786 = vmatprep.mubr.f32.mxu0 0.0
    %v2787 = vand.u32 %v2255, 4294901760
    %2788 = vmatmul.mubr.f32.gmra.mrb[0].mxu0 %v2787
    %v2789 = vpop.f32.mrb[0].mxu0
    %v2790 = vadd.f32 %v2677, %v2789
    %v2791 = vpop.f32.mrb[0].mxu0
    %2792 = vmatprep.mubr.f32.mxu0 0.0
    %v2793 = vand.u32 %v2258, 4294901760
    %2794 = vmatmul.mubr.f32.gmra.mrb[0].mxu0 %v2793
    %v2795 = vpop.f32.mrb[0].mxu0
    %v2796 = vadd.f32 %v2685, %v2795
    %v2797 = vpop.f32.mrb[0].mxu0
    %2798 = vmatprep.mubr.f32.mxu0 0.0
    %v2799 = vand.u32 %v2261, 4294901760
    %2800 = vmatmul.mubr.f32.gmra.mrb[0].mxu0 %v2799
    %v2801 = vpop.f32.mrb[0].mxu0
    %v2802 = vadd.f32 %v2693, %v2801
    %v2803 = vpop.f32.mrb[0].mxu0
    %2804 = vmatprep.mubr.f32.mxu0 0.0
    %v2805 = vand.u32 %v2264, 4294901760
    %2806 = vmatmul.mubr.f32.gmra.mrb[0].mxu0 %v2805
    %v2807 = vpop.f32.mrb[0].mxu0
    %v2808 = vadd.f32 %v2701, %v2807
    %v2809 = vpop.f32.mrb[0].mxu0
    %2810 = vdwg.mxu0
    %2811 = vmatprep.subr.mxu0 0.0
    %v2812 = vand.u32 %v803, 4294901760
    %2813 = vmatpush1.msra.mxu0 %v2812
    %2814 = vmatprep.subr.mxu0 0.0
    %v2815 = vand.u32 %v804, 4294901760
    %2816 = vmatpush1.msra.mxu0 %v2815
    %2817 = vmatprep.subr.mxu0 0.0
    %v2818 = vand.u32 %v1531, 4294901760
    %2819 = vmatpush1.msra.mxu0 %v2818
    %2820 = vmatprep.subr.mxu0 0.0
    %v2821 = vand.u32 %v1532, 4294901760
    %2822 = vmatpush1.msra.mxu0 %v2821
    %2823 = vmatprep.subr.mxu0 0.0
    %v2824 = vand.u32 %v2227, 4294901760
    %2825 = vmatpush1.msra.mxu0 %v2824
    %2826 = vmatprep.subr.mxu0 0.0
    %v2827 = vand.u32 %v2228, 4294901760
    %2828 = vmatpush1.msra.mxu0 %v2827
    %2829 = vmatprep.subr.mxu0 0.0
    %2830 = vmatpush1.msra.mxu0 0.0
    %2831 = vmatprep.subr.mxu0 0.0
    %2832 = vmatpush1.msra.mxu0 0.0
    %2833 = vmatprep.subr.mxu0 0.0
    %2834 = vmatpush1.msra.mxu0 0.0
    %2835 = vmatprep.subr.mxu0 0.0
    %2836 = vmatpush1.msra.mxu0 0.0
    %2837 = vmatprep.subr.mxu0 0.0
    %2838 = vmatpush1.msra.mxu0 0.0
    %2839 = vmatprep.subr.mxu0 0.0
    %2840 = vmatpush1.msra.mxu0 0.0
    %2841 = vmatprep.subr.mxu0 0.0
    %2842 = vmatpush1.msra.mxu0 0.0
    %2843 = vmatprep.subr.mxu0 0.0
    %2844 = vmatpush1.msra.mxu0 0.0
    %2845 = vmatprep.subr.mxu0 0.0
    %2846 = vmatpush1.msra.mxu0 0.0
    %2847 = vmatprep.subr.mxu0 0.0
    %2848 = vmatpush1.msra.mxu0 0.0
    %2849 = vmatprep.subr.mxu0 0.0
    %2850 = vmatpush1.msra.mxu0 0.0
    %2851 = vmatprep.subr.mxu0 0.0
    %2852 = vmatpush1.msra.mxu0 0.0
    %2853 = vmatprep.subr.mxu0 0.0
    %2854 = vmatpush1.msra.mxu0 0.0
    %2855 = vmatprep.subr.mxu0 0.0
    %2856 = vmatpush1.msra.mxu0 0.0
    %2857 = vmatprep.subr.mxu0 0.0
    %2858 = vmatpush1.msra.mxu0 0.0
    %2859 = vmatprep.subr.mxu0 0.0
    %2860 = vmatpush1.msra.mxu0 0.0
    %2861 = vmatprep.subr.mxu0 0.0
    %2862 = vmatpush1.msra.mxu0 0.0
    %2863 = vmatprep.subr.mxu0 0.0
    %2864 = vmatpush1.msra.mxu0 0.0
    %2865 = vmatprep.subr.mxu0 0.0
    %2866 = vmatpush1.msra.mxu0 0.0
    %2867 = vmatprep.subr.mxu0 0.0
    %2868 = vmatpush1.msra.mxu0 0.0
    %2869 = vmatprep.subr.mxu0 0.0
    %2870 = vmatpush1.msra.mxu0 0.0
    %2871 = vmatprep.subr.mxu0 0.0
    %2872 = vmatpush1.msra.mxu0 0.0
    %2873 = vmatprep.subr.mxu0 0.0
    %2874 = vmatpush1.msra.mxu0 0.0
    %2875 = vmatprep.subr.mxu0 0.0
    %2876 = vmatpush1.msra.mxu0 0.0
    %2877 = vmatprep.subr.mxu0 0.0
    %2878 = vmatpush1.msra.mxu0 0.0
    %2879 = vmatprep.subr.mxu0 0.0
    %2880 = vmatpush1.msra.mxu0 0.0
    %2881 = vmatprep.mubr.f32.mxu0 0.0
    %v2882 = vand.u32 %v2255, 4294901760
    %2883 = vmatmul.mubr.f32.gmra.mrb[0].mxu0 %v2882
    %v2884 = vpop.f32.mrb[0].mxu0
    %v2885 = vadd.f32 %v2790, %v2884
    %v2886 = vpop.f32.mrb[0].mxu0
    %2887 = vmatprep.mubr.f32.mxu0 0.0
    %v2888 = vand.u32 %v2258, 4294901760
    %2889 = vmatmul.mubr.f32.gmra.mrb[0].mxu0 %v2888
    %v2890 = vpop.f32.mrb[0].mxu0
    %v2891 = vadd.f32 %v2796, %v2890
    %v2892 = vpop.f32.mrb[0].mxu0
    %2893 = vmatprep.mubr.f32.mxu0 0.0
    %v2894 = vand.u32 %v2261, 4294901760
    %2895 = vmatmul.mubr.f32.gmra.mrb[0].mxu0 %v2894
    %v2896 = vpop.f32.mrb[0].mxu0
    %v2897 = vadd.f32 %v2802, %v2896
    %v2898 = vpop.f32.mrb[0].mxu0
    %2899 = vmatprep.mubr.f32.mxu0 0.0
    %v2900 = vand.u32 %v2264, 4294901760
    %2901 = vmatmul.mubr.f32.gmra.mrb[0].mxu0 %v2900
    %v2902 = vpop.f32.mrb[0].mxu0
    %v2903 = vadd.f32 %v2808, %v2902
    %v2904 = vpop.f32.mrb[0].mxu0
    %2905 = vdwg.mxu0
    %v2906 = vadd.f32 %v2885, %v52
    %v2907 = vadd.f32 %v2891, %v53
    %v2908 = vadd.f32 %v2897, %v54
    %v2909 = vadd.f32 %v2903, %v55
    %v2910 = vmax.f32 %v2906, 0.0
    %v2911 = vmax.f32 %v2907, 0.0
    %v2912 = vmax.f32 %v2908, 0.0
    %v2913 = vmax.f32 %v2909, 0.0
    %2914 = vst [vmem:[#allocation7] sm:$0xff] %v2910
    %2915 = vst [vmem:[#allocation7 + $0x8] sm:$0xff] %v2911
    %2916 = vst [vmem:[#allocation7 + $0x10] sm:$0xff] %v2912
    %2917 = vst [vmem:[#allocation7 + $0x18] sm:$0xff] %v2913
    // Predicated region
    $region34: #{tpu_custom_call.1} parent=1 // pred_check
      _
    $region35: #{tpu_custom_call.1} parent=1 // pred_check_branch
      %2919 = sbr.rel (0) target = $region37
    $region36: #{tpu_custom_call.1} parent=1 // pred_region
      %s2921 = ssub.s32 512, 512
      %2922 = vsyncadd [#allocation4], %s2921
      %s2923 = sshll.u32 [#allocation7], 4
      %s2924 = int_to_ptr.vmem [resolvable:$true] %s2923
      %2929 = dma.vmem_to_hbm [thread:$0]  %s2924, 512, %s6, [#allocation4], 128, 128, 8
    $region37: #{tpu_custom_call.1} parent=1 // pred_fallthru
      _
    // Predicated region
    $region38: #{tpu_custom_call.1} parent=1 // pred_check
      _
    $region39: #{tpu_custom_call.1} parent=1 // pred_check_branch
      %2931 = sbr.rel (0) target = $region41
    $region40: #{tpu_custom_call.1} parent=1 // pred_region
      %2932 = dma.done [#allocation4], 512
    $region41: #{tpu_custom_call.1} parent=1 // pred_fallthru
      _
    %2933 = vsyncpa [#allocation3], 1
    %2934 = vsyncpa [#allocation6], 1
    %2935 = vsyncpa [#allocation4], 1

</llo_original>
